<compile_context>
chip_gen: v6e
topology: v6e:2x2x1
jax: 0.10.0
libtpu: 0.0.40
codegen_flags: <defaults>
</compile_context>

<pallas_src>
import jax
import jax.numpy as jnp
from jax.experimental import pallas as pl
from jax.experimental.pallas import tpu as pltpu

# PyTorch layer dims (in_features, out_features)
LAYER_DIMS = [(150, 200), (200, 100), (100, 50), (50, 300), (300, 200), (200, 3)]


def _round_up(x, m):
    return ((x + m - 1) // m) * m


# Lane-dense (multiple-of-128) padded dims per layer.
PADDED_DIMS = [(_round_up(i, 128), _round_up(o, 128)) for i, o in LAYER_DIMS]
IN_DIM = LAYER_DIMS[0][0]      # 150
OUT_DIM = LAYER_DIMS[-1][1]    # 3
IN_PAD = PADDED_DIMS[0][0]     # 256
OUT_PAD = PADDED_DIMS[-1][1]   # 128


def mlp_kernel(x_ref,
               w1_ref, b1_ref,
               w2_ref, b2_ref,
               w3_ref, b3_ref,
               w4_ref, b4_ref,
               w5_ref, b5_ref,
               w6_ref, b6_ref,
               out_ref):
    h = x_ref[...]  # (TB, 256) f32

    def linear(h, w_ref, b_ref, relu=True):
        # bf16 operands into the MXU, f32 accumulation; bias/ReLU on the VPU in f32.
        y = jnp.dot(h.astype(jnp.bfloat16), w_ref[...],
                    preferred_element_type=jnp.float32)
        y = y + b_ref[...]                       # (1, out) broadcasts over batch
        return jnp.maximum(y, 0.0) if relu else y

    h = linear(h, w1_ref, b1_ref)
    h = linear(h, w2_ref, b2_ref)
    h = linear(h, w3_ref, b3_ref)
    h = linear(h, w4_ref, b4_ref)
    h = linear(h, w5_ref, b5_ref)
    out_ref[...] = linear(h, w6_ref, b6_ref, relu=False)   # final layer: no ReLU


def pack_params(params):
    """Zero-pad params to lane-dense shapes; weights -> bf16, biases stay f32.

    `params` is a list of (W, b) with W shaped (in, out) (transposed vs
    PyTorch's weight, identical math: h @ W + b == x @ weight.T + bias).
    Padded rows/cols are zero, so padded activation columns are exactly zero
    and the real outputs are unchanged.
    """
    packed = []
    for (w, b), (pin, pout) in zip(params, PADDED_DIMS):
        fin, fout = w.shape
        wp = jnp.zeros((pin, pout), jnp.float32).at[:fin, :fout].set(w)
        bp = jnp.zeros((1, pout), jnp.float32).at[:, :fout].set(b.reshape(1, -1))
        packed.extend([wp.astype(jnp.bfloat16), bp])
    return packed


def mlp_forward(x, packed_params, *, max_tb=256):
    """x: (B, 150) float32, packed_params: output of pack_params."""
    B = x.shape[0]

    # Batch tiling: single grid step for small B, TB-row tiles for large B.
    if B <= max_tb:
        TB = _round_up(max(B, 8), 8)
        B_pad = TB
    else:
        TB = max_tb
        B_pad = _round_up(B, TB)
    grid = (B_pad // TB,)

    # Lane-dense padded input slab.
    xp = jnp.zeros((B_pad, IN_PAD), jnp.float32).at[:B, :IN_DIM].set(x)

    # Weights/biases: full-array blocks, constant index_map -> resident across
    # batch tiles (fetched once).
    weight_specs = []
    for (pin, pout) in PADDED_DIMS:
        weight_specs.append(pl.BlockSpec((pin, pout), lambda i: (0, 0)))
        weight_specs.append(pl.BlockSpec((1, pout), lambda i: (0, 0)))

    w_bytes = sum(pin * pout * 2 + pout * 4 for pin, pout in PADDED_DIMS)
    cost = pl.CostEstimate(
        flops=2 * B_pad * sum(pin * pout for pin, pout in PADDED_DIMS),
        transcendentals=0,
        bytes_accessed=xp.size * 4 + B_pad * OUT_PAD * 4 + w_bytes,
    )

    out_padded = pl.pallas_call(
        mlp_kernel,
        out_shape=jax.ShapeDtypeStruct((B_pad, OUT_PAD), jnp.float32),
        grid=grid,
        in_specs=[pl.BlockSpec((TB, IN_PAD), lambda i: (i, 0))] + weight_specs,
        out_specs=pl.BlockSpec((TB, OUT_PAD), lambda i: (i, 0)),
        compiler_params=pltpu.CompilerParams(
            dimension_semantics=("parallel",)),   # v7x: both TCs share batch tiles
        cost_estimate=cost,
    )(xp, *packed_params)

    return out_padded[:B, :OUT_DIM]


def init_params(key):
    """Deterministic init mimicking PyTorch Linear default:
    U(-1/sqrt(fan_in), 1/sqrt(fan_in)) for both weight and bias."""
    params = []
    for (fan_in, fan_out) in LAYER_DIMS:
        key, kw, kb = jax.random.split(key, 3)
        bound = 1.0 / jnp.sqrt(fan_in)
        w = jax.random.uniform(kw, (fan_in, fan_out), jnp.float32, -bound, bound)
        b = jax.random.uniform(kb, (1, fan_out), jnp.float32, -bound, bound)
        params.append((w, b))
    return params


def reference_forward(x, params):
    h = x
    for i, (w, b) in enumerate(params):
        h = h @ w + b
        if i < len(params) - 1:
            h = jnp.maximum(h, 0.0)
    return h


if __name__ == "__main__":
    key = jax.random.PRNGKey(0)
    key, kx = jax.random.split(key)

    B = 8
    x = jax.random.normal(kx, (B, 150), jnp.float32)
    params = init_params(key)
    packed = pack_params(params)

    out = mlp_forward(x, packed)
    out = jax.block_until_ready(out)

    ref = reference_forward(x, params)
    assert out.shape == (B, 3), out.shape
    # bf16 weights/activations into the MXU -> ~1e-2 relative error vs f32 ref.
    assert jnp.allclose(out, ref, atol=5e-2, rtol=5e-2), "mismatch vs reference"

    # Exercise the batch-tiled (grid > 1) path with resident weights.
    B2 = 40
    key, kx2 = jax.random.split(key)
    x2 = jax.random.normal(kx2, (B2, 150), jnp.float32)
    out2 = jax.block_until_ready(mlp_forward(x2, packed, max_tb=16))
    ref2 = reference_forward(x2, params)
    assert out2.shape == (B2, 3), out2.shape
    assert jnp.allclose(out2, ref2, atol=5e-2, rtol=5e-2), "tiled-path mismatch"

    print("KERNEL_OK")
</pallas_src>

<mosaic_0001>
module attributes {stable_mosaic.version = 11 : i64} {
  func.func @mlp_kernel(%arg0: i32, %arg1: memref<8x256xf32, #tpu.memory_space<vmem>>, %arg2: memref<256x256xbf16, #tpu.memory_space<vmem>>, %arg3: memref<1x256xf32, #tpu.memory_space<vmem>>, %arg4: memref<256x128xbf16, #tpu.memory_space<vmem>>, %arg5: memref<1x128xf32, #tpu.memory_space<vmem>>, %arg6: memref<128x128xbf16, #tpu.memory_space<vmem>>, %arg7: memref<1x128xf32, #tpu.memory_space<vmem>>, %arg8: memref<128x384xbf16, #tpu.memory_space<vmem>>, %arg9: memref<1x384xf32, #tpu.memory_space<vmem>>, %arg10: memref<384x256xbf16, #tpu.memory_space<vmem>>, %arg11: memref<1x256xf32, #tpu.memory_space<vmem>>, %arg12: memref<256x128xbf16, #tpu.memory_space<vmem>>, %arg13: memref<1x128xf32, #tpu.memory_space<vmem>>, %arg14: memref<8x128xf32, #tpu.memory_space<vmem>>) attributes {dimension_semantics = [#tpu.dimension_semantics<parallel>], iteration_bounds = array<i64: 1>, scalar_prefetch = 0 : i64, scratch_operands = 0 : i64, tpu.core_type = #tpu.core_type<tc>, window_params = [{transform_indices = @transform_0, window_bounds = array<i64: 8, 256>}, {pipeline_mode = #tpu.pipeline_mode<synchronous>, transform_indices = @transform_1, window_bounds = array<i64: 256, 256>}, {pipeline_mode = #tpu.pipeline_mode<synchronous>, transform_indices = @transform_2, window_bounds = array<i64: 1, 256>}, {pipeline_mode = #tpu.pipeline_mode<synchronous>, transform_indices = @transform_3, window_bounds = array<i64: 256, 128>}, {pipeline_mode = #tpu.pipeline_mode<synchronous>, transform_indices = @transform_4, window_bounds = array<i64: 1, 128>}, {pipeline_mode = #tpu.pipeline_mode<synchronous>, transform_indices = @transform_5, window_bounds = array<i64: 128, 128>}, {pipeline_mode = #tpu.pipeline_mode<synchronous>, transform_indices = @transform_6, window_bounds = array<i64: 1, 128>}, {pipeline_mode = #tpu.pipeline_mode<synchronous>, transform_indices = @transform_7, window_bounds = array<i64: 128, 384>}, {pipeline_mode = #tpu.pipeline_mode<synchronous>, transform_indices = @transform_8, window_bounds = array<i64: 1, 384>}, {pipeline_mode = #tpu.pipeline_mode<synchronous>, transform_indices = @transform_9, window_bounds = array<i64: 384, 256>}, {pipeline_mode = #tpu.pipeline_mode<synchronous>, transform_indices = @transform_10, window_bounds = array<i64: 1, 256>}, {pipeline_mode = #tpu.pipeline_mode<synchronous>, transform_indices = @transform_11, window_bounds = array<i64: 256, 128>}, {pipeline_mode = #tpu.pipeline_mode<synchronous>, transform_indices = @transform_12, window_bounds = array<i64: 1, 128>}, {transform_indices = @transform_13, window_bounds = array<i64: 8, 128>}]} {
    %c0 = arith.constant 0 : index
    %c0_0 = arith.constant 0 : index
    %0 = vector.load %arg1[%c0, %c0_0] : memref<8x256xf32, #tpu.memory_space<vmem>>, vector<8x256xf32>
    %1 = arith.truncf %0 : vector<8x256xf32> to vector<8x256xbf16>
    %c0_1 = arith.constant 0 : index
    %c0_2 = arith.constant 0 : index
    %2 = vector.load %arg2[%c0_1, %c0_2] : memref<256x256xbf16, #tpu.memory_space<vmem>>, vector<256x256xbf16>
    %cst = arith.constant dense<0.000000e+00> : vector<8x256xf32>
    %3 = tpu.matmul %1, %2, %cst {dimension_numbers = #tpu.dot_dimension_numbers<[1], [0], [0], [1], [0, 0, 1, 1], [], []>} : vector<8x256xbf16>, vector<256x256xbf16>, vector<8x256xf32> -> vector<8x256xf32>
    %c0_3 = arith.constant 0 : index
    %c0_4 = arith.constant 0 : index
    %4 = vector.load %arg3[%c0_3, %c0_4] : memref<1x256xf32, #tpu.memory_space<vmem>>, vector<1x256xf32>
    %5 = vector.broadcast %4 : vector<1x256xf32> to vector<8x256xf32>
    %6 = arith.addf %3, %5 : vector<8x256xf32>
    %cst_5 = arith.constant 0.000000e+00 : f32
    %7 = vector.broadcast %cst_5 : f32 to vector<8x256xf32>
    %8 = arith.maximumf %6, %7 : vector<8x256xf32>
    %9 = arith.truncf %8 : vector<8x256xf32> to vector<8x256xbf16>
    %c0_6 = arith.constant 0 : index
    %c0_7 = arith.constant 0 : index
    %10 = vector.load %arg4[%c0_6, %c0_7] : memref<256x128xbf16, #tpu.memory_space<vmem>>, vector<256x128xbf16>
    %cst_8 = arith.constant dense<0.000000e+00> : vector<8x128xf32>
    %11 = tpu.matmul %9, %10, %cst_8 {dimension_numbers = #tpu.dot_dimension_numbers<[1], [0], [0], [1], [0, 0, 1, 1], [], []>} : vector<8x256xbf16>, vector<256x128xbf16>, vector<8x128xf32> -> vector<8x128xf32>
    %c0_9 = arith.constant 0 : index
    %c0_10 = arith.constant 0 : index
    %12 = vector.load %arg5[%c0_9, %c0_10] : memref<1x128xf32, #tpu.memory_space<vmem>>, vector<1x128xf32>
    %13 = vector.broadcast %12 : vector<1x128xf32> to vector<8x128xf32>
    %14 = arith.addf %11, %13 : vector<8x128xf32>
    %cst_11 = arith.constant 0.000000e+00 : f32
    %15 = vector.broadcast %cst_11 : f32 to vector<8x128xf32>
    %16 = arith.maximumf %14, %15 : vector<8x128xf32>
    %17 = arith.truncf %16 : vector<8x128xf32> to vector<8x128xbf16>
    %c0_12 = arith.constant 0 : index
    %c0_13 = arith.constant 0 : index
    %18 = vector.load %arg6[%c0_12, %c0_13] : memref<128x128xbf16, #tpu.memory_space<vmem>>, vector<128x128xbf16>
    %cst_14 = arith.constant dense<0.000000e+00> : vector<8x128xf32>
    %19 = tpu.matmul %17, %18, %cst_14 {dimension_numbers = #tpu.dot_dimension_numbers<[1], [0], [0], [1], [0, 0, 1, 1], [], []>} : vector<8x128xbf16>, vector<128x128xbf16>, vector<8x128xf32> -> vector<8x128xf32>
    %c0_15 = arith.constant 0 : index
    %c0_16 = arith.constant 0 : index
    %20 = vector.load %arg7[%c0_15, %c0_16] : memref<1x128xf32, #tpu.memory_space<vmem>>, vector<1x128xf32>
    %21 = vector.broadcast %20 : vector<1x128xf32> to vector<8x128xf32>
    %22 = arith.addf %19, %21 : vector<8x128xf32>
    %cst_17 = arith.constant 0.000000e+00 : f32
    %23 = vector.broadcast %cst_17 : f32 to vector<8x128xf32>
    %24 = arith.maximumf %22, %23 : vector<8x128xf32>
    %25 = arith.truncf %24 : vector<8x128xf32> to vector<8x128xbf16>
    %c0_18 = arith.constant 0 : index
    %c0_19 = arith.constant 0 : index
    %26 = vector.load %arg8[%c0_18, %c0_19] : memref<128x384xbf16, #tpu.memory_space<vmem>>, vector<128x384xbf16>
    %cst_20 = arith.constant dense<0.000000e+00> : vector<8x384xf32>
    %27 = tpu.matmul %25, %26, %cst_20 {dimension_numbers = #tpu.dot_dimension_numbers<[1], [0], [0], [1], [0, 0, 1, 1], [], []>} : vector<8x128xbf16>, vector<128x384xbf16>, vector<8x384xf32> -> vector<8x384xf32>
    %c0_21 = arith.constant 0 : index
    %c0_22 = arith.constant 0 : index
    %28 = vector.load %arg9[%c0_21, %c0_22] : memref<1x384xf32, #tpu.memory_space<vmem>>, vector<1x384xf32>
    %29 = vector.broadcast %28 : vector<1x384xf32> to vector<8x384xf32>
    %30 = arith.addf %27, %29 : vector<8x384xf32>
    %cst_23 = arith.constant 0.000000e+00 : f32
    %31 = vector.broadcast %cst_23 : f32 to vector<8x384xf32>
    %32 = arith.maximumf %30, %31 : vector<8x384xf32>
    %33 = arith.truncf %32 : vector<8x384xf32> to vector<8x384xbf16>
    %c0_24 = arith.constant 0 : index
    %c0_25 = arith.constant 0 : index
    %34 = vector.load %arg10[%c0_24, %c0_25] : memref<384x256xbf16, #tpu.memory_space<vmem>>, vector<384x256xbf16>
    %cst_26 = arith.constant dense<0.000000e+00> : vector<8x256xf32>
    %35 = tpu.matmul %33, %34, %cst_26 {dimension_numbers = #tpu.dot_dimension_numbers<[1], [0], [0], [1], [0, 0, 1, 1], [], []>} : vector<8x384xbf16>, vector<384x256xbf16>, vector<8x256xf32> -> vector<8x256xf32>
    %c0_27 = arith.constant 0 : index
    %c0_28 = arith.constant 0 : index
    %36 = vector.load %arg11[%c0_27, %c0_28] : memref<1x256xf32, #tpu.memory_space<vmem>>, vector<1x256xf32>
    %37 = vector.broadcast %36 : vector<1x256xf32> to vector<8x256xf32>
    %38 = arith.addf %35, %37 : vector<8x256xf32>
    %cst_29 = arith.constant 0.000000e+00 : f32
    %39 = vector.broadcast %cst_29 : f32 to vector<8x256xf32>
    %40 = arith.maximumf %38, %39 : vector<8x256xf32>
    %41 = arith.truncf %40 : vector<8x256xf32> to vector<8x256xbf16>
    %c0_30 = arith.constant 0 : index
    %c0_31 = arith.constant 0 : index
    %42 = vector.load %arg12[%c0_30, %c0_31] : memref<256x128xbf16, #tpu.memory_space<vmem>>, vector<256x128xbf16>
    %cst_32 = arith.constant dense<0.000000e+00> : vector<8x128xf32>
    %43 = tpu.matmul %41, %42, %cst_32 {dimension_numbers = #tpu.dot_dimension_numbers<[1], [0], [0], [1], [0, 0, 1, 1], [], []>} : vector<8x256xbf16>, vector<256x128xbf16>, vector<8x128xf32> -> vector<8x128xf32>
    %c0_33 = arith.constant 0 : index
    %c0_34 = arith.constant 0 : index
    %44 = vector.load %arg13[%c0_33, %c0_34] : memref<1x128xf32, #tpu.memory_space<vmem>>, vector<1x128xf32>
    %45 = vector.broadcast %44 : vector<1x128xf32> to vector<8x128xf32>
    %46 = arith.addf %43, %45 : vector<8x128xf32>
    %c0_35 = arith.constant 0 : index
    %c0_36 = arith.constant 0 : index
    %47 = vector.load %arg14[%c0_35, %c0_36] : memref<8x128xf32, #tpu.memory_space<vmem>>, vector<8x128xf32>
    tpu.vector_store %arg14[%c0_35, %c0_36], %46 {strides = array<i32>} : memref<8x128xf32, #tpu.memory_space<vmem>>, vector<8x128xf32>,
    return
  }
  func.func @transform_0(%arg0: i32) -> (i32, i32) {
    %c0_i32 = arith.constant 0 : i32
    %c0_i32_0 = arith.constant 0 : i32
    return %arg0, %c0_i32 : i32, i32
  }
  func.func @transform_1(%arg0: i32) -> (i32, i32) {
    %c0_i32 = arith.constant 0 : i32
    %c0_i32_0 = arith.constant 0 : i32
    %c0_i32_1 = arith.constant 0 : i32
    return %c0_i32, %c0_i32_0 : i32, i32
  }
  func.func @transform_2(%arg0: i32) -> (i32, i32) {
    %c0_i32 = arith.constant 0 : i32
    %c0_i32_0 = arith.constant 0 : i32
    %c0_i32_1 = arith.constant 0 : i32
    return %c0_i32, %c0_i32_0 : i32, i32
  }
  func.func @transform_3(%arg0: i32) -> (i32, i32) {
    %c0_i32 = arith.constant 0 : i32
    %c0_i32_0 = arith.constant 0 : i32
    %c0_i32_1 = arith.constant 0 : i32
    return %c0_i32, %c0_i32_0 : i32, i32
  }
  func.func @transform_4(%arg0: i32) -> (i32, i32) {
    %c0_i32 = arith.constant 0 : i32
    %c0_i32_0 = arith.constant 0 : i32
    %c0_i32_1 = arith.constant 0 : i32
    return %c0_i32, %c0_i32_0 : i32, i32
  }
  func.func @transform_5(%arg0: i32) -> (i32, i32) {
    %c0_i32 = arith.constant 0 : i32
    %c0_i32_0 = arith.constant 0 : i32
    %c0_i32_1 = arith.constant 0 : i32
    return %c0_i32, %c0_i32_0 : i32, i32
  }
  func.func @transform_6(%arg0: i32) -> (i32, i32) {
    %c0_i32 = arith.constant 0 : i32
    %c0_i32_0 = arith.constant 0 : i32
    %c0_i32_1 = arith.constant 0 : i32
    return %c0_i32, %c0_i32_0 : i32, i32
  }
  func.func @transform_7(%arg0: i32) -> (i32, i32) {
    %c0_i32 = arith.constant 0 : i32
    %c0_i32_0 = arith.constant 0 : i32
    %c0_i32_1 = arith.constant 0 : i32
    return %c0_i32, %c0_i32_0 : i32, i32
  }
  func.func @transform_8(%arg0: i32) -> (i32, i32) {
    %c0_i32 = arith.constant 0 : i32
    %c0_i32_0 = arith.constant 0 : i32
    %c0_i32_1 = arith.constant 0 : i32
    return %c0_i32, %c0_i32_0 : i32, i32
  }
  func.func @transform_9(%arg0: i32) -> (i32, i32) {
    %c0_i32 = arith.constant 0 : i32
    %c0_i32_0 = arith.constant 0 : i32
    %c0_i32_1 = arith.constant 0 : i32
    return %c0_i32, %c0_i32_0 : i32, i32
  }
  func.func @transform_10(%arg0: i32) -> (i32, i32) {
    %c0_i32 = arith.constant 0 : i32
    %c0_i32_0 = arith.constant 0 : i32
    %c0_i32_1 = arith.constant 0 : i32
    return %c0_i32, %c0_i32_0 : i32, i32
  }
  func.func @transform_11(%arg0: i32) -> (i32, i32) {
    %c0_i32 = arith.constant 0 : i32
    %c0_i32_0 = arith.constant 0 : i32
    %c0_i32_1 = arith.constant 0 : i32
    return %c0_i32, %c0_i32_0 : i32, i32
  }
  func.func @transform_12(%arg0: i32) -> (i32, i32) {
    %c0_i32 = arith.constant 0 : i32
    %c0_i32_0 = arith.constant 0 : i32
    %c0_i32_1 = arith.constant 0 : i32
    return %c0_i32, %c0_i32_0 : i32, i32
  }
  func.func @transform_13(%arg0: i32) -> (i32, i32) {
    %c0_i32 = arith.constant 0 : i32
    %c0_i32_0 = arith.constant 0 : i32
    return %arg0, %c0_i32 : i32, i32
  }
}

</mosaic_0001>

<llo_original>
// kernel: tpu_custom_call.1
$region0: #{tpu_custom_call.1}
  #allocation0 [shape = 'u32[]', space=smem, size = 0x4, offset = 0x4, fixed_abs, tag = 'smem constant byte address 0x4 - core index']
  #allocation1 [shape = 'u32[144,128]{1,0:T(1,128)}', space=vmem, size = 0x12000, scoped, tag = 'internal scratch']
  %s0 = inlined_call_operand.hbm [shape: f32[8,256], index: 0, kind: input, shape index: {}]
  %s1 = inlined_call_operand.hbm [shape: bf16[256,256], index: 1, kind: input, shape index: {}]
  %s2 = inlined_call_operand.vmem [shape: f32[1,256], index: 2, kind: input, shape index: {}]
  %s3 = inlined_call_operand.hbm [shape: bf16[256,128], index: 3, kind: input, shape index: {}]
  %s4 = inlined_call_operand.hbm [shape: f32[1,128], index: 4, kind: input, shape index: {}]
  %s5 = inlined_call_operand.hbm [shape: bf16[128,128], index: 5, kind: input, shape index: {}]
  %s6 = inlined_call_operand.vmem [shape: f32[1,128], index: 6, kind: input, shape index: {}]
  %s7 = inlined_call_operand.hbm [shape: bf16[128,384], index: 7, kind: input, shape index: {}]
  %s8 = inlined_call_operand.vmem [shape: f32[1,384], index: 8, kind: input, shape index: {}]
  %s9 = inlined_call_operand.hbm [shape: bf16[384,256], index: 9, kind: input, shape index: {}]
  %s10 = inlined_call_operand.vmem [shape: f32[1,256], index: 10, kind: input, shape index: {}]
  %s11 = inlined_call_operand.hbm [shape: bf16[256,128], index: 11, kind: input, shape index: {}]
  %s12 = inlined_call_operand.vmem [shape: f32[1,128], index: 12, kind: input, shape index: {}]
  %s13 = inlined_call_operand.hbm [shape: f32[8,128], index: 13, kind: output, shape index: {}]
  %s14 = sld [smem:[#allocation0]]
  $region94: #{tpu_custom_call.1} parent=0
    _
  %s16 = ssub.s32 1, %s14
  %s17 = scalar_select 0, %s16, %s14
  $region1: #{tpu_custom_call.1} parent=0
    #allocation2 [shape = 'u8[8192]{0}', space=vmem, size = 0x2000, scoped, tag = 'input window, operand 0, single buffered']
    #allocation3 [shape = 's32[1]{0}', space=sflag, size = 0x4, scoped, tag = 'scoped memory for tpu_custom_call.1']
    #allocation4 [shape = 's32[1]{0}', space=sflag, size = 0x4, scoped, tag = 'scoped memory for tpu_custom_call.1']
    #allocation5 [shape = 'u8[131072]{0}', space=vmem, size = 0x20000, scoped, tag = 'input window, operand 1, single buffered']
    #allocation6 [shape = 's32[1]{0}', space=sflag, size = 0x4, scoped, tag = 'scoped memory for tpu_custom_call.1']
    #allocation7 [shape = 'u8[65536]{0}', space=vmem, size = 0x10000, scoped, tag = 'input window, operand 3, single buffered']
    #allocation8 [shape = 'u8[512]{0}', space=vmem, size = 0x400, scoped, tag = 'input window, operand 4, single buffered']
    #allocation9 [shape = 's32[1]{0}', space=sflag, size = 0x4, scoped, tag = 'scoped memory for tpu_custom_call.1']
    #allocation10 [shape = 'u8[32768]{0}', space=vmem, size = 0x8000, scoped, tag = 'input window, operand 5, single buffered']
    #allocation11 [shape = 'u8[98304]{0}', space=vmem, size = 0x18000, scoped, tag = 'input window, operand 7, single buffered']
    #allocation12 [shape = 's32[1]{0}', space=sflag, size = 0x4, scoped, tag = 'scoped memory for tpu_custom_call.1']
    #allocation13 [shape = 'u8[196608]{0}', space=vmem, size = 0x30000, scoped, tag = 'input window, operand 9, single buffered']
    #allocation14 [shape = 'u8[65536]{0}', space=vmem, size = 0x10000, scoped, tag = 'input window, operand 11, single buffered']
    #allocation15 [shape = 's32[1]{0}', space=sflag, size = 0x4, scoped, tag = 'scoped memory for tpu_custom_call.1']
    #allocation16 [shape = 'u8[4096]{0}', space=vmem, size = 0x1000, scoped, tag = 'output window, operand 0, single buffered']
    %18 = vsyncpa [#allocation3], 0
    %19 = vsyncpa [#allocation6], 0
    %20 = vsyncpa [#allocation9], 0
    %21 = vsyncpa [#allocation12], 0
    %22 = vsyncpa [#allocation15], 0
    %23 = vsyncpa [#allocation4], 0
    // Predicated region
    $region2: #{tpu_custom_call.1} parent=1 // pred_check
      _
    $region3: #{tpu_custom_call.1} parent=1 // pred_check_branch
      %25 = sbr.rel (0) target = $region5
    $region4: #{tpu_custom_call.1} parent=1 // pred_region
      %s27 = ssub.s32 256, 256
      %28 = vsyncadd [#allocation3], %s27
      %s30 = sshll.u32 [#allocation2], 4
      %s31 = int_to_ptr.vmem [resolvable:$true] %s30
      %33 = dma.hbm_to_vmem [thread:$0]  %s0, 256, %s31, [#allocation3]
    $region5: #{tpu_custom_call.1} parent=1 // pred_fallthru
      _
    // Predicated region
    $region6: #{tpu_custom_call.1} parent=1 // pred_check
      _
    $region7: #{tpu_custom_call.1} parent=1 // pred_check_branch
      %35 = sbr.rel (0) target = $region9
    $region8: #{tpu_custom_call.1} parent=1 // pred_region
      %s37 = ssub.s32 4096, 4096
      %38 = vsyncadd [#allocation6], %s37
      %s39 = sshll.u32 [#allocation5], 4
      %s40 = int_to_ptr.vmem [resolvable:$true] %s39
      %45 = dma.hbm_to_vmem [thread:$0]  %s1, 4096, %s40, [#allocation6], 128, 128, 8
    $region9: #{tpu_custom_call.1} parent=1 // pred_fallthru
      _
    // Predicated region
    $region10: #{tpu_custom_call.1} parent=1 // pred_check
      _
    $region11: #{tpu_custom_call.1} parent=1 // pred_check_branch
      %47 = sbr.rel (0) target = $region13
    $region12: #{tpu_custom_call.1} parent=1 // pred_region
      _
    $region13: #{tpu_custom_call.1} parent=1 // pred_fallthru
      _
    // Predicated region
    $region14: #{tpu_custom_call.1} parent=1 // pred_check
      _
    $region15: #{tpu_custom_call.1} parent=1 // pred_check_branch
      %49 = sbr.rel (0) target = $region17
    $region16: #{tpu_custom_call.1} parent=1 // pred_region
      %s51 = ssub.s32 2048, 2048
      %52 = vsyncadd [#allocation6], %s51
      %s53 = sshll.u32 [#allocation7], 4
      %s54 = int_to_ptr.vmem [resolvable:$true] %s53
      %59 = dma.hbm_to_vmem [thread:$0]  %s3, 2048, %s54, [#allocation6], 64, 64, 4
    $region17: #{tpu_custom_call.1} parent=1 // pred_fallthru
      _
    // Predicated region
    $region18: #{tpu_custom_call.1} parent=1 // pred_check
      _
    $region19: #{tpu_custom_call.1} parent=1 // pred_check_branch
      %61 = sbr.rel (0) target = $region21
    $region20: #{tpu_custom_call.1} parent=1 // pred_region
      %s63 = ssub.s32 16, 16
      %64 = vsyncadd [#allocation9], %s63
      %s66 = sshll.u32 [#allocation8], 4
      %s67 = int_to_ptr.vmem [resolvable:$true] %s66
      %69 = dma.hbm_to_vmem [thread:$0]  %s4, 16, %s67, [#allocation9]
    $region21: #{tpu_custom_call.1} parent=1 // pred_fallthru
      _
    // Predicated region
    $region22: #{tpu_custom_call.1} parent=1 // pred_check
      _
    $region23: #{tpu_custom_call.1} parent=1 // pred_check_branch
      %71 = sbr.rel (0) target = $region25
    $region24: #{tpu_custom_call.1} parent=1 // pred_region
      %s73 = ssub.s32 1024, 1024
      %74 = vsyncadd [#allocation9], %s73
      %s75 = sshll.u32 [#allocation10], 4
      %s76 = int_to_ptr.vmem [resolvable:$true] %s75
      %81 = dma.hbm_to_vmem [thread:$0]  %s5, 1024, %s76, [#allocation9], 64, 64, 4
    $region25: #{tpu_custom_call.1} parent=1 // pred_fallthru
      _
    // Predicated region
    $region26: #{tpu_custom_call.1} parent=1 // pred_check
      _
    $region27: #{tpu_custom_call.1} parent=1 // pred_check_branch
      %83 = sbr.rel (0) target = $region29
    $region28: #{tpu_custom_call.1} parent=1 // pred_region
      _
    $region29: #{tpu_custom_call.1} parent=1 // pred_fallthru
      _
    // Predicated region
    $region30: #{tpu_custom_call.1} parent=1 // pred_check
      _
    $region31: #{tpu_custom_call.1} parent=1 // pred_check_branch
      %85 = sbr.rel (0) target = $region33
    $region32: #{tpu_custom_call.1} parent=1 // pred_region
      %s87 = ssub.s32 3072, 3072
      %88 = vsyncadd [#allocation12], %s87
      %s89 = sshll.u32 [#allocation11], 4
      %s90 = int_to_ptr.vmem [resolvable:$true] %s89
      %95 = dma.hbm_to_vmem [thread:$0]  %s7, 3072, %s90, [#allocation12], 192, 192, 12
    $region33: #{tpu_custom_call.1} parent=1 // pred_fallthru
      _
    // Predicated region
    $region34: #{tpu_custom_call.1} parent=1 // pred_check
      _
    $region35: #{tpu_custom_call.1} parent=1 // pred_check_branch
      %97 = sbr.rel (0) target = $region37
    $region36: #{tpu_custom_call.1} parent=1 // pred_region
      _
    $region37: #{tpu_custom_call.1} parent=1 // pred_fallthru
      _
    // Predicated region
    $region38: #{tpu_custom_call.1} parent=1 // pred_check
      _
    $region39: #{tpu_custom_call.1} parent=1 // pred_check_branch
      %99 = sbr.rel (0) target = $region41
    $region40: #{tpu_custom_call.1} parent=1 // pred_region
      %s101 = ssub.s32 6144, 6144
      %102 = vsyncadd [#allocation12], %s101
      %s103 = sshll.u32 [#allocation13], 4
      %s104 = int_to_ptr.vmem [resolvable:$true] %s103
      %109 = dma.hbm_to_vmem [thread:$0]  %s9, 6144, %s104, [#allocation12], 128, 128, 8
    $region41: #{tpu_custom_call.1} parent=1 // pred_fallthru
      _
    // Predicated region
    $region42: #{tpu_custom_call.1} parent=1 // pred_check
      _
    $region43: #{tpu_custom_call.1} parent=1 // pred_check_branch
      %111 = sbr.rel (0) target = $region45
    $region44: #{tpu_custom_call.1} parent=1 // pred_region
      _
    $region45: #{tpu_custom_call.1} parent=1 // pred_fallthru
      _
    // Predicated region
    $region46: #{tpu_custom_call.1} parent=1 // pred_check
      _
    $region47: #{tpu_custom_call.1} parent=1 // pred_check_branch
      %113 = sbr.rel (0) target = $region49
    $region48: #{tpu_custom_call.1} parent=1 // pred_region
      %s115 = ssub.s32 2048, 2048
      %116 = vsyncadd [#allocation15], %s115
      %s117 = sshll.u32 [#allocation14], 4
      %s118 = int_to_ptr.vmem [resolvable:$true] %s117
      %123 = dma.hbm_to_vmem [thread:$0]  %s11, 2048, %s118, [#allocation15], 64, 64, 4
    $region49: #{tpu_custom_call.1} parent=1 // pred_fallthru
      _
    // Predicated region
    $region50: #{tpu_custom_call.1} parent=1 // pred_check
      _
    $region51: #{tpu_custom_call.1} parent=1 // pred_check_branch
      %125 = sbr.rel (0) target = $region53
    $region52: #{tpu_custom_call.1} parent=1 // pred_region
      _
    $region53: #{tpu_custom_call.1} parent=1 // pred_fallthru
      _
    // Predicated region
    $region54: #{tpu_custom_call.1} parent=1 // pred_check
      _
    $region55: #{tpu_custom_call.1} parent=1 // pred_check_branch
      %127 = sbr.rel (0) target = $region57
    $region56: #{tpu_custom_call.1} parent=1 // pred_region
      %128 = dma.done [#allocation3], 256
    $region57: #{tpu_custom_call.1} parent=1 // pred_fallthru
      _
    // Predicated region
    $region58: #{tpu_custom_call.1} parent=1 // pred_check
      _
    $region59: #{tpu_custom_call.1} parent=1 // pred_check_branch
      %130 = sbr.rel (0) target = $region61
    $region60: #{tpu_custom_call.1} parent=1 // pred_region
      %131 = dma.done [#allocation6], 4096
    $region61: #{tpu_custom_call.1} parent=1 // pred_fallthru
      _
    // Predicated region
    $region62: #{tpu_custom_call.1} parent=1 // pred_check
      _
    $region63: #{tpu_custom_call.1} parent=1 // pred_check_branch
      %133 = sbr.rel (0) target = $region65
    $region64: #{tpu_custom_call.1} parent=1 // pred_region
      %134 = dma.done [#allocation6], 2048
    $region65: #{tpu_custom_call.1} parent=1 // pred_fallthru
      _
    // Predicated region
    $region66: #{tpu_custom_call.1} parent=1 // pred_check
      _
    $region67: #{tpu_custom_call.1} parent=1 // pred_check_branch
      %136 = sbr.rel (0) target = $region69
    $region68: #{tpu_custom_call.1} parent=1 // pred_region
      %137 = dma.done [#allocation9], 16
    $region69: #{tpu_custom_call.1} parent=1 // pred_fallthru
      _
    // Predicated region
    $region70: #{tpu_custom_call.1} parent=1 // pred_check
      _
    $region71: #{tpu_custom_call.1} parent=1 // pred_check_branch
      %139 = sbr.rel (0) target = $region73
    $region72: #{tpu_custom_call.1} parent=1 // pred_region
      %140 = dma.done [#allocation9], 1024
    $region73: #{tpu_custom_call.1} parent=1 // pred_fallthru
      _
    // Predicated region
    $region74: #{tpu_custom_call.1} parent=1 // pred_check
      _
    $region75: #{tpu_custom_call.1} parent=1 // pred_check_branch
      %142 = sbr.rel (0) target = $region77
    $region76: #{tpu_custom_call.1} parent=1 // pred_region
      %143 = dma.done [#allocation12], 3072
    $region77: #{tpu_custom_call.1} parent=1 // pred_fallthru
      _
    // Predicated region
    $region78: #{tpu_custom_call.1} parent=1 // pred_check
      _
    $region79: #{tpu_custom_call.1} parent=1 // pred_check_branch
      %145 = sbr.rel (0) target = $region81
    $region80: #{tpu_custom_call.1} parent=1 // pred_region
      %146 = dma.done [#allocation12], 6144
    $region81: #{tpu_custom_call.1} parent=1 // pred_fallthru
      _
    // Predicated region
    $region82: #{tpu_custom_call.1} parent=1 // pred_check
      _
    $region83: #{tpu_custom_call.1} parent=1 // pred_check_branch
      %148 = sbr.rel (0) target = $region85
    $region84: #{tpu_custom_call.1} parent=1 // pred_region
      %149 = dma.done [#allocation15], 2048
    $region85: #{tpu_custom_call.1} parent=1 // pred_fallthru
      _
    %v151 = vld [vmem:[#allocation2] sm:$0xff]
    %v152 = vld [vmem:[#allocation2 + $0x8] sm:$0xff]
    %v153 = vpack.c.bf16 %v151, %v151
    %v154 = vpack.c.bf16 %v152, %v152
    %v155 = vld [vmem:[#allocation5] sm:$0xff]
    %v156 = vld [vmem:[#allocation5 + $0x8] sm:$0xff]
    %v157 = vld [vmem:[#allocation5 + $0x10] sm:$0xff]
    %v158 = vld [vmem:[#allocation5 + $0x18] sm:$0xff]
    %v159 = vld [vmem:[#allocation5 + $0x20] sm:$0xff]
    %v160 = vld [vmem:[#allocation5 + $0x28] sm:$0xff]
    %v161 = vld [vmem:[#allocation5 + $0x30] sm:$0xff]
    %v162 = vld [vmem:[#allocation5 + $0x38] sm:$0xff]
    %v163 = vld [vmem:[#allocation5 + $0x40] sm:$0xff]
    %v164 = vld [vmem:[#allocation5 + $0x48] sm:$0xff]
    %v165 = vld [vmem:[#allocation5 + $0x50] sm:$0xff]
    %v166 = vld [vmem:[#allocation5 + $0x58] sm:$0xff]
    %v167 = vld [vmem:[#allocation5 + $0x60] sm:$0xff]
    %v168 = vld [vmem:[#allocation5 + $0x68] sm:$0xff]
    %v169 = vld [vmem:[#allocation5 + $0x70] sm:$0xff]
    %v170 = vld [vmem:[#allocation5 + $0x78] sm:$0xff]
    %v171 = vld [vmem:[#allocation5 + $0x80] sm:$0xff]
    %v172 = vld [vmem:[#allocation5 + $0x88] sm:$0xff]
    %v173 = vld [vmem:[#allocation5 + $0x90] sm:$0xff]
    %v174 = vld [vmem:[#allocation5 + $0x98] sm:$0xff]
    %v175 = vld [vmem:[#allocation5 + $0xa0] sm:$0xff]
    %v176 = vld [vmem:[#allocation5 + $0xa8] sm:$0xff]
    %v177 = vld [vmem:[#allocation5 + $0xb0] sm:$0xff]
    %v178 = vld [vmem:[#allocation5 + $0xb8] sm:$0xff]
    %v179 = vld [vmem:[#allocation5 + $0xc0] sm:$0xff]
    %v180 = vld [vmem:[#allocation5 + $0xc8] sm:$0xff]
    %v181 = vld [vmem:[#allocation5 + $0xd0] sm:$0xff]
    %v182 = vld [vmem:[#allocation5 + $0xd8] sm:$0xff]
    %v183 = vld [vmem:[#allocation5 + $0xe0] sm:$0xff]
    %v184 = vld [vmem:[#allocation5 + $0xe8] sm:$0xff]
    %v185 = vld [vmem:[#allocation5 + $0xf0] sm:$0xff]
    %v186 = vld [vmem:[#allocation5 + $0xf8] sm:$0xff]
    %v187 = vld [vmem:[%s2] sm:$0x3]
    %v189 = vlaneseq
    %v190 = vshrl.u32 %v189, 7
    %v191 = vsub.s32 0, %v190
    %v192 = vrot.slane %v187, %v191
    %v193 = vlaneseq
    %v194 = vshrl.u32 %v193, 7
    %v195 = vsub.s32 1, %v194
    %v196 = vrot.slane %v187, %v195
    %v231 = vunpack.c.l.b16 %v155
    %v232 = vunpack.c.h.b16 %v155
    %v233 = vunpack.c.l.b16 %v156
    %v234 = vunpack.c.h.b16 %v156
    %v235 = vunpack.c.l.b16 %v157
    %v236 = vunpack.c.h.b16 %v157
    %v237 = vunpack.c.l.b16 %v158
    %v238 = vunpack.c.h.b16 %v158
    %v239 = vunpack.c.l.b16 %v159
    %v240 = vunpack.c.h.b16 %v159
    %v241 = vunpack.c.l.b16 %v160
    %v242 = vunpack.c.h.b16 %v160
    %v243 = vunpack.c.l.b16 %v161
    %v244 = vunpack.c.h.b16 %v161
    %v245 = vunpack.c.l.b16 %v162
    %v246 = vunpack.c.h.b16 %v162
    %v247 = vunpack.c.l.b16 %v163
    %v248 = vunpack.c.h.b16 %v163
    %v249 = vunpack.c.l.b16 %v164
    %v250 = vunpack.c.h.b16 %v164
    %v251 = vunpack.c.l.b16 %v165
    %v252 = vunpack.c.h.b16 %v165
    %v253 = vunpack.c.l.b16 %v166
    %v254 = vunpack.c.h.b16 %v166
    %v255 = vunpack.c.l.b16 %v167
    %v256 = vunpack.c.h.b16 %v167
    %v257 = vunpack.c.l.b16 %v168
    %v258 = vunpack.c.h.b16 %v168
    %v259 = vunpack.c.l.b16 %v169
    %v260 = vunpack.c.h.b16 %v169
    %v261 = vunpack.c.l.b16 %v170
    %v262 = vunpack.c.h.b16 %v170
    %v263 = vunpack.c.l.b16 %v171
    %v264 = vunpack.c.h.b16 %v171
    %v265 = vunpack.c.l.b16 %v172
    %v266 = vunpack.c.h.b16 %v172
    %v267 = vunpack.c.l.b16 %v173
    %v268 = vunpack.c.h.b16 %v173
    %v269 = vunpack.c.l.b16 %v174
    %v270 = vunpack.c.h.b16 %v174
    %v271 = vunpack.c.l.b16 %v175
    %v272 = vunpack.c.h.b16 %v175
    %v273 = vunpack.c.l.b16 %v176
    %v274 = vunpack.c.h.b16 %v176
    %v275 = vunpack.c.l.b16 %v177
    %v276 = vunpack.c.h.b16 %v177
    %v277 = vunpack.c.l.b16 %v178
    %v278 = vunpack.c.h.b16 %v178
    %v279 = vunpack.c.l.b16 %v179
    %v280 = vunpack.c.h.b16 %v179
    %v281 = vunpack.c.l.b16 %v180
    %v282 = vunpack.c.h.b16 %v180
    %v283 = vunpack.c.l.b16 %v181
    %v284 = vunpack.c.h.b16 %v181
    %v285 = vunpack.c.l.b16 %v182
    %v286 = vunpack.c.h.b16 %v182
    %v287 = vunpack.c.l.b16 %v183
    %v288 = vunpack.c.h.b16 %v183
    %v289 = vunpack.c.l.b16 %v184
    %v290 = vunpack.c.h.b16 %v184
    %v291 = vunpack.c.l.b16 %v185
    %v292 = vunpack.c.h.b16 %v185
    %v293 = vunpack.c.l.b16 %v186
    %v294 = vunpack.c.h.b16 %v186
    %v295 = vpack.c.b16 %v233, %v231
    %v296 = vpack.c.b16 %v234, %v232
    %v297 = vpack.c.b16 %v237, %v235
    %v298 = vpack.c.b16 %v238, %v236
    %v299 = vpack.c.b16 %v241, %v239
    %v300 = vpack.c.b16 %v242, %v240
    %v301 = vpack.c.b16 %v245, %v243
    %v302 = vpack.c.b16 %v246, %v244
    %v303 = vpack.c.b16 %v249, %v247
    %v304 = vpack.c.b16 %v250, %v248
    %v305 = vpack.c.b16 %v253, %v251
    %v306 = vpack.c.b16 %v254, %v252
    %v307 = vpack.c.b16 %v257, %v255
    %v308 = vpack.c.b16 %v258, %v256
    %v309 = vpack.c.b16 %v261, %v259
    %v310 = vpack.c.b16 %v262, %v260
    %v311 = vpack.c.b16 %v265, %v263
    %v312 = vpack.c.b16 %v266, %v264
    %v313 = vpack.c.b16 %v269, %v267
    %v314 = vpack.c.b16 %v270, %v268
    %v315 = vpack.c.b16 %v273, %v271
    %v316 = vpack.c.b16 %v274, %v272
    %v317 = vpack.c.b16 %v277, %v275
    %v318 = vpack.c.b16 %v278, %v276
    %v319 = vpack.c.b16 %v281, %v279
    %v320 = vpack.c.b16 %v282, %v280
    %v321 = vpack.c.b16 %v285, %v283
    %v322 = vpack.c.b16 %v286, %v284
    %v323 = vpack.c.b16 %v289, %v287
    %v324 = vpack.c.b16 %v290, %v288
    %v325 = vpack.c.b16 %v293, %v291
    %v326 = vpack.c.b16 %v294, %v292
    %359 = vmatprep.subr.bf16.mxu0 %v310
    %360 = vmatpush1.bf16.msra.mxu0 %v309
    %361 = vmatprep.subr.bf16.mxu0 %v308
    %362 = vmatpush1.bf16.msra.mxu0 %v307
    %363 = vmatprep.subr.bf16.mxu0 %v306
    %364 = vmatpush1.bf16.msra.mxu0 %v305
    %365 = vmatprep.subr.bf16.mxu0 %v304
    %366 = vmatpush1.bf16.msra.mxu0 %v303
    %367 = vmatprep.subr.bf16.mxu0 %v302
    %368 = vmatpush1.bf16.msra.mxu0 %v301
    %369 = vmatprep.subr.bf16.mxu0 %v300
    %370 = vmatpush1.bf16.msra.mxu0 %v299
    %371 = vmatprep.subr.bf16.mxu0 %v298
    %372 = vmatpush1.bf16.msra.mxu0 %v297
    %373 = vmatprep.subr.bf16.mxu0 %v296
    %374 = vmatpush1.bf16.msra.mxu0 %v295
    %375 = vmatprep.subr.bf16.mxu0 %v326
    %376 = vmatpush2.bf16.msra.mxu0 %v325
    %377 = vmatprep.subr.bf16.mxu0 %v324
    %378 = vmatpush2.bf16.msra.mxu0 %v323
    %379 = vmatprep.subr.bf16.mxu0 %v322
    %380 = vmatpush2.bf16.msra.mxu0 %v321
    %381 = vmatprep.subr.bf16.mxu0 %v320
    %382 = vmatpush2.bf16.msra.mxu0 %v319
    %383 = vmatprep.subr.bf16.mxu0 %v318
    %384 = vmatpush2.bf16.msra.mxu0 %v317
    %385 = vmatprep.subr.bf16.mxu0 %v316
    %386 = vmatpush2.bf16.msra.mxu0 %v315
    %387 = vmatprep.subr.bf16.mxu0 %v314
    %388 = vmatpush2.bf16.msra.mxu0 %v313
    %389 = vmatprep.subr.bf16.mxu0 %v312
    %390 = vmatpush2.bf16.msra.mxu0 %v311
    %391 = vmatprep.mubr.bf16.mxu0 %v154
    %392 = vmatmul.mubr.bf16.gmra.mxu0 %v153
    %v393 = vpop.f32.mrf.mxu0
    %v394 = vadd.f32 %v192, %v393
    %v395 = vpop.f32.mrf.mxu0
    %v396 = vadd.f32 %v196, %v395
    %v397 = vpop.f32.mrf.mxu0
    %v398 = vpop.f32.mrf.mxu0
    %399 = vdwg.mxu0
    %v400 = vmax.f32 %v394, 0.0
    %v401 = vmax.f32 %v396, 0.0
    %v402 = vpack.c.bf16 %v400, %v400
    %v403 = vpack.c.bf16 %v401, %v401
    %v404 = vld [vmem:[#allocation7] sm:$0xf]
    %v405 = vld [vmem:[#allocation7 + $0x4] sm:$0xf]
    %v406 = vld [vmem:[#allocation7 + $0x8] sm:$0xf]
    %v407 = vld [vmem:[#allocation7 + $0xc] sm:$0xf]
    %v408 = vld [vmem:[#allocation7 + $0x10] sm:$0xf]
    %v409 = vld [vmem:[#allocation7 + $0x14] sm:$0xf]
    %v410 = vld [vmem:[#allocation7 + $0x18] sm:$0xf]
    %v411 = vld [vmem:[#allocation7 + $0x1c] sm:$0xf]
    %v412 = vld [vmem:[#allocation7 + $0x20] sm:$0xf]
    %v413 = vld [vmem:[#allocation7 + $0x24] sm:$0xf]
    %v414 = vld [vmem:[#allocation7 + $0x28] sm:$0xf]
    %v415 = vld [vmem:[#allocation7 + $0x2c] sm:$0xf]
    %v416 = vld [vmem:[#allocation7 + $0x30] sm:$0xf]
    %v417 = vld [vmem:[#allocation7 + $0x34] sm:$0xf]
    %v418 = vld [vmem:[#allocation7 + $0x38] sm:$0xf]
    %v419 = vld [vmem:[#allocation7 + $0x3c] sm:$0xf]
    %v420 = vld [vmem:[#allocation7 + $0x40] sm:$0xf]
    %v421 = vld [vmem:[#allocation7 + $0x44] sm:$0xf]
    %v422 = vld [vmem:[#allocation7 + $0x48] sm:$0xf]
    %v423 = vld [vmem:[#allocation7 + $0x4c] sm:$0xf]
    %v424 = vld [vmem:[#allocation7 + $0x50] sm:$0xf]
    %v425 = vld [vmem:[#allocation7 + $0x54] sm:$0xf]
    %v426 = vld [vmem:[#allocation7 + $0x58] sm:$0xf]
    %v427 = vld [vmem:[#allocation7 + $0x5c] sm:$0xf]
    %v428 = vld [vmem:[#allocation7 + $0x60] sm:$0xf]
    %v429 = vld [vmem:[#allocation7 + $0x64] sm:$0xf]
    %v430 = vld [vmem:[#allocation7 + $0x68] sm:$0xf]
    %v431 = vld [vmem:[#allocation7 + $0x6c] sm:$0xf]
    %v432 = vld [vmem:[#allocation7 + $0x70] sm:$0xf]
    %v433 = vld [vmem:[#allocation7 + $0x74] sm:$0xf]
    %v434 = vld [vmem:[#allocation7 + $0x78] sm:$0xf]
    %v435 = vld [vmem:[#allocation7 + $0x7c] sm:$0xf]
    %v436 = vld [vmem:[#allocation8] sm:$0x1]
    %v438 = vlaneseq
    %v439 = vshrl.u32 %v438, 7
    %v440 = vsub.s32 0, %v439
    %v441 = vrot.slane %v436, %v440
    %v475 = vunpack.c.l.b16 %v404
    %v476 = vunpack.c.l.b16 %v405
    %v477 = vunpack.c.l.b16 %v406
    %v478 = vunpack.c.l.b16 %v407
    %v479 = vunpack.c.l.b16 %v408
    %v480 = vunpack.c.l.b16 %v409
    %v481 = vunpack.c.l.b16 %v410
    %v482 = vunpack.c.l.b16 %v411
    %v483 = vunpack.c.l.b16 %v412
    %v484 = vunpack.c.l.b16 %v413
    %v485 = vunpack.c.l.b16 %v414
    %v486 = vunpack.c.l.b16 %v415
    %v487 = vunpack.c.l.b16 %v416
    %v488 = vunpack.c.l.b16 %v417
    %v489 = vunpack.c.l.b16 %v418
    %v490 = vunpack.c.l.b16 %v419
    %v491 = vunpack.c.l.b16 %v420
    %v492 = vunpack.c.l.b16 %v421
    %v493 = vunpack.c.l.b16 %v422
    %v494 = vunpack.c.l.b16 %v423
    %v495 = vunpack.c.l.b16 %v424
    %v496 = vunpack.c.l.b16 %v425
    %v497 = vunpack.c.l.b16 %v426
    %v498 = vunpack.c.l.b16 %v427
    %v499 = vunpack.c.l.b16 %v428
    %v500 = vunpack.c.l.b16 %v429
    %v501 = vunpack.c.l.b16 %v430
    %v502 = vunpack.c.l.b16 %v431
    %v503 = vunpack.c.l.b16 %v432
    %v504 = vunpack.c.l.b16 %v433
    %v505 = vunpack.c.l.b16 %v434
    %v506 = vunpack.c.l.b16 %v435
    %v507 = vpack.c.b16 %v476, %v475
    %v508 = vpack.c.b16 %v478, %v477
    %v509 = vpack.c.b16 %v480, %v479
    %v510 = vpack.c.b16 %v482, %v481
    %v511 = vpack.c.b16 %v484, %v483
    %v512 = vpack.c.b16 %v486, %v485
    %v513 = vpack.c.b16 %v488, %v487
    %v514 = vpack.c.b16 %v490, %v489
    %v515 = vpack.c.b16 %v492, %v491
    %v516 = vpack.c.b16 %v494, %v493
    %v517 = vpack.c.b16 %v496, %v495
    %v518 = vpack.c.b16 %v498, %v497
    %v519 = vpack.c.b16 %v500, %v499
    %v520 = vpack.c.b16 %v502, %v501
    %v521 = vpack.c.b16 %v504, %v503
    %v522 = vpack.c.b16 %v506, %v505
    %539 = vmatprep.subr.bf16.mxu0 0
    %540 = vmatpush1.bf16.msra.mxu0 %v514
    %541 = vmatprep.subr.bf16.mxu0 0
    %542 = vmatpush1.bf16.msra.mxu0 %v513
    %543 = vmatprep.subr.bf16.mxu0 0
    %544 = vmatpush1.bf16.msra.mxu0 %v512
    %545 = vmatprep.subr.bf16.mxu0 0
    %546 = vmatpush1.bf16.msra.mxu0 %v511
    %547 = vmatprep.subr.bf16.mxu0 0
    %548 = vmatpush1.bf16.msra.mxu0 %v510
    %549 = vmatprep.subr.bf16.mxu0 0
    %550 = vmatpush1.bf16.msra.mxu0 %v509
    %551 = vmatprep.subr.bf16.mxu0 0
    %552 = vmatpush1.bf16.msra.mxu0 %v508
    %553 = vmatprep.subr.bf16.mxu0 0
    %554 = vmatpush1.bf16.msra.mxu0 %v507
    %555 = vmatprep.subr.bf16.mxu0 0
    %556 = vmatpush2.bf16.msra.mxu0 %v522
    %557 = vmatprep.subr.bf16.mxu0 0
    %558 = vmatpush2.bf16.msra.mxu0 %v521
    %559 = vmatprep.subr.bf16.mxu0 0
    %560 = vmatpush2.bf16.msra.mxu0 %v520
    %561 = vmatprep.subr.bf16.mxu0 0
    %562 = vmatpush2.bf16.msra.mxu0 %v519
    %563 = vmatprep.subr.bf16.mxu0 0
    %564 = vmatpush2.bf16.msra.mxu0 %v518
    %565 = vmatprep.subr.bf16.mxu0 0
    %566 = vmatpush2.bf16.msra.mxu0 %v517
    %567 = vmatprep.subr.bf16.mxu0 0
    %568 = vmatpush2.bf16.msra.mxu0 %v516
    %569 = vmatprep.subr.bf16.mxu0 0
    %570 = vmatpush2.bf16.msra.mxu0 %v515
    %571 = vmatprep.mubr.bf16.mxu0 %v403
    %572 = vmatmul.mubr.bf16.gmra.mxu0 %v402
    %v573 = vpop.f32.mrf.mxu0
    %v574 = vadd.f32 %v441, %v573
    %v575 = vpop.f32.mrf.mxu0
    %v576 = vpop.f32.mrf.mxu0
    %v577 = vpop.f32.mrf.mxu0
    %578 = vdwg.mxu0
    %v579 = vmax.f32 %v574, 0.0
    %v580 = vpack.c.bf16 %v579, %v579
    %v581 = vld [vmem:[#allocation10] sm:$0xf]
    %v582 = vld [vmem:[#allocation10 + $0x4] sm:$0xf]
    %v583 = vld [vmem:[#allocation10 + $0x8] sm:$0xf]
    %v584 = vld [vmem:[#allocation10 + $0xc] sm:$0xf]
    %v585 = vld [vmem:[#allocation10 + $0x10] sm:$0xf]
    %v586 = vld [vmem:[#allocation10 + $0x14] sm:$0xf]
    %v587 = vld [vmem:[#allocation10 + $0x18] sm:$0xf]
    %v588 = vld [vmem:[#allocation10 + $0x1c] sm:$0xf]
    %v589 = vld [vmem:[#allocation10 + $0x20] sm:$0xf]
    %v590 = vld [vmem:[#allocation10 + $0x24] sm:$0xf]
    %v591 = vld [vmem:[#allocation10 + $0x28] sm:$0xf]
    %v592 = vld [vmem:[#allocation10 + $0x2c] sm:$0xf]
    %v593 = vld [vmem:[#allocation10 + $0x30] sm:$0xf]
    %v594 = vld [vmem:[#allocation10 + $0x34] sm:$0xf]
    %v595 = vld [vmem:[#allocation10 + $0x38] sm:$0xf]
    %v596 = vld [vmem:[#allocation10 + $0x3c] sm:$0xf]
    %v597 = vld [vmem:[%s6] sm:$0x1]
    %v599 = vlaneseq
    %v600 = vshrl.u32 %v599, 7
    %v601 = vsub.s32 0, %v600
    %v602 = vrot.slane %v597, %v601
    %v620 = vunpack.c.l.b16 %v581
    %v621 = vunpack.c.l.b16 %v582
    %v622 = vunpack.c.l.b16 %v583
    %v623 = vunpack.c.l.b16 %v584
    %v624 = vunpack.c.l.b16 %v585
    %v625 = vunpack.c.l.b16 %v586
    %v626 = vunpack.c.l.b16 %v587
    %v627 = vunpack.c.l.b16 %v588
    %v628 = vunpack.c.l.b16 %v589
    %v629 = vunpack.c.l.b16 %v590
    %v630 = vunpack.c.l.b16 %v591
    %v631 = vunpack.c.l.b16 %v592
    %v632 = vunpack.c.l.b16 %v593
    %v633 = vunpack.c.l.b16 %v594
    %v634 = vunpack.c.l.b16 %v595
    %v635 = vunpack.c.l.b16 %v596
    %v636 = vpack.c.b16 %v621, %v620
    %v637 = vpack.c.b16 %v623, %v622
    %v638 = vpack.c.b16 %v625, %v624
    %v639 = vpack.c.b16 %v627, %v626
    %v640 = vpack.c.b16 %v629, %v628
    %v641 = vpack.c.b16 %v631, %v630
    %v642 = vpack.c.b16 %v633, %v632
    %v643 = vpack.c.b16 %v635, %v634
    %652 = vmatprep.subr.bf16.mxu0 0
    %653 = vmatpush1.bf16.msra.mxu0 %v643
    %654 = vmatprep.subr.bf16.mxu0 0
    %655 = vmatpush1.bf16.msra.mxu0 %v642
    %656 = vmatprep.subr.bf16.mxu0 0
    %657 = vmatpush1.bf16.msra.mxu0 %v641
    %658 = vmatprep.subr.bf16.mxu0 0
    %659 = vmatpush1.bf16.msra.mxu0 %v640
    %660 = vmatprep.subr.bf16.mxu0 0
    %661 = vmatpush1.bf16.msra.mxu0 %v639
    %662 = vmatprep.subr.bf16.mxu0 0
    %663 = vmatpush1.bf16.msra.mxu0 %v638
    %664 = vmatprep.subr.bf16.mxu0 0
    %665 = vmatpush1.bf16.msra.mxu0 %v637
    %666 = vmatprep.subr.bf16.mxu0 0
    %667 = vmatpush1.bf16.msra.mxu0 %v636
    %668 = vmatprep.subr.bf16.mxu0 0
    %669 = vmatpush2.bf16.msra.mxu0 0
    %670 = vmatprep.subr.bf16.mxu0 0
    %671 = vmatpush2.bf16.msra.mxu0 0
    %672 = vmatprep.subr.bf16.mxu0 0
    %673 = vmatpush2.bf16.msra.mxu0 0
    %674 = vmatprep.subr.bf16.mxu0 0
    %675 = vmatpush2.bf16.msra.mxu0 0
    %676 = vmatprep.subr.bf16.mxu0 0
    %677 = vmatpush2.bf16.msra.mxu0 0
    %678 = vmatprep.subr.bf16.mxu0 0
    %679 = vmatpush2.bf16.msra.mxu0 0
    %680 = vmatprep.subr.bf16.mxu0 0
    %681 = vmatpush2.bf16.msra.mxu0 0
    %682 = vmatprep.subr.bf16.mxu0 0
    %683 = vmatpush2.bf16.msra.mxu0 0
    %684 = vmatprep.mubr.bf16.mxu0 0
    %685 = vmatmul.mubr.bf16.gmra.mxu0 %v580
    %v686 = vpop.f32.mrf.mxu0
    %v687 = vadd.f32 %v602, %v686
    %v688 = vpop.f32.mrf.mxu0
    %v689 = vpop.f32.mrf.mxu0
    %v690 = vpop.f32.mrf.mxu0
    %691 = vdwg.mxu0
    %v692 = vmax.f32 %v687, 0.0
    %v693 = vpack.c.bf16 %v692, %v692
    %v694 = vld [vmem:[#allocation11] sm:$0xff]
    %v695 = vld [vmem:[#allocation11 + $0x8] sm:$0xf]
    %v696 = vld [vmem:[#allocation11 + $0xc] sm:$0xff]
    %v697 = vld [vmem:[#allocation11 + $0x14] sm:$0xf]
    %v698 = vld [vmem:[#allocation11 + $0x18] sm:$0xff]
    %v699 = vld [vmem:[#allocation11 + $0x20] sm:$0xf]
    %v700 = vld [vmem:[#allocation11 + $0x24] sm:$0xff]
    %v701 = vld [vmem:[#allocation11 + $0x2c] sm:$0xf]
    %v702 = vld [vmem:[#allocation11 + $0x30] sm:$0xff]
    %v703 = vld [vmem:[#allocation11 + $0x38] sm:$0xf]
    %v704 = vld [vmem:[#allocation11 + $0x3c] sm:$0xff]
    %v705 = vld [vmem:[#allocation11 + $0x44] sm:$0xf]
    %v706 = vld [vmem:[#allocation11 + $0x48] sm:$0xff]
    %v707 = vld [vmem:[#allocation11 + $0x50] sm:$0xf]
    %v708 = vld [vmem:[#allocation11 + $0x54] sm:$0xff]
    %v709 = vld [vmem:[#allocation11 + $0x5c] sm:$0xf]
    %v710 = vld [vmem:[#allocation11 + $0x60] sm:$0xff]
    %v711 = vld [vmem:[#allocation11 + $0x68] sm:$0xf]
    %v712 = vld [vmem:[#allocation11 + $0x6c] sm:$0xff]
    %v713 = vld [vmem:[#allocation11 + $0x74] sm:$0xf]
    %v714 = vld [vmem:[#allocation11 + $0x78] sm:$0xff]
    %v715 = vld [vmem:[#allocation11 + $0x80] sm:$0xf]
    %v716 = vld [vmem:[#allocation11 + $0x84] sm:$0xff]
    %v717 = vld [vmem:[#allocation11 + $0x8c] sm:$0xf]
    %v718 = vld [vmem:[#allocation11 + $0x90] sm:$0xff]
    %v719 = vld [vmem:[#allocation11 + $0x98] sm:$0xf]
    %v720 = vld [vmem:[#allocation11 + $0x9c] sm:$0xff]
    %v721 = vld [vmem:[#allocation11 + $0xa4] sm:$0xf]
    %v722 = vld [vmem:[#allocation11 + $0xa8] sm:$0xff]
    %v723 = vld [vmem:[#allocation11 + $0xb0] sm:$0xf]
    %v724 = vld [vmem:[#allocation11 + $0xb4] sm:$0xff]
    %v725 = vld [vmem:[#allocation11 + $0xbc] sm:$0xf]
    %v726 = vld [vmem:[%s8] sm:$0x7]
    %v728 = vlaneseq
    %v729 = vshrl.u32 %v728, 7
    %v730 = vsub.s32 0, %v729
    %v731 = vrot.slane %v726, %v730
    %v732 = vlaneseq
    %v733 = vshrl.u32 %v732, 7
    %v734 = vsub.s32 1, %v733
    %v735 = vrot.slane %v726, %v734
    %v736 = vlaneseq
    %v737 = vshrl.u32 %v736, 7
    %v738 = vsub.s32 2, %v737
    %v739 = vrot.slane %v726, %v738
    %v775 = vunpack.c.l.b16 %v694
    %v776 = vunpack.c.h.b16 %v694
    %v777 = vunpack.c.l.b16 %v695
    %v778 = vunpack.c.l.b16 %v696
    %v779 = vunpack.c.h.b16 %v696
    %v780 = vunpack.c.l.b16 %v697
    %v781 = vunpack.c.l.b16 %v698
    %v782 = vunpack.c.h.b16 %v698
    %v783 = vunpack.c.l.b16 %v699
    %v784 = vunpack.c.l.b16 %v700
    %v785 = vunpack.c.h.b16 %v700
    %v786 = vunpack.c.l.b16 %v701
    %v787 = vunpack.c.l.b16 %v702
    %v788 = vunpack.c.h.b16 %v702
    %v789 = vunpack.c.l.b16 %v703
    %v790 = vunpack.c.l.b16 %v704
    %v791 = vunpack.c.h.b16 %v704
    %v792 = vunpack.c.l.b16 %v705
    %v793 = vunpack.c.l.b16 %v706
    %v794 = vunpack.c.h.b16 %v706
    %v795 = vunpack.c.l.b16 %v707
    %v796 = vunpack.c.l.b16 %v708
    %v797 = vunpack.c.h.b16 %v708
    %v798 = vunpack.c.l.b16 %v709
    %v799 = vunpack.c.l.b16 %v710
    %v800 = vunpack.c.h.b16 %v710
    %v801 = vunpack.c.l.b16 %v711
    %v802 = vunpack.c.l.b16 %v712
    %v803 = vunpack.c.h.b16 %v712
    %v804 = vunpack.c.l.b16 %v713
    %v805 = vunpack.c.l.b16 %v714
    %v806 = vunpack.c.h.b16 %v714
    %v807 = vunpack.c.l.b16 %v715
    %v808 = vunpack.c.l.b16 %v716
    %v809 = vunpack.c.h.b16 %v716
    %v810 = vunpack.c.l.b16 %v717
    %v811 = vunpack.c.l.b16 %v718
    %v812 = vunpack.c.h.b16 %v718
    %v813 = vunpack.c.l.b16 %v719
    %v814 = vunpack.c.l.b16 %v720
    %v815 = vunpack.c.h.b16 %v720
    %v816 = vunpack.c.l.b16 %v721
    %v817 = vunpack.c.l.b16 %v722
    %v818 = vunpack.c.h.b16 %v722
    %v819 = vunpack.c.l.b16 %v723
    %v820 = vunpack.c.l.b16 %v724
    %v821 = vunpack.c.h.b16 %v724
    %v822 = vunpack.c.l.b16 %v725
    %v823 = vpack.c.b16 %v778, %v775
    %v824 = vpack.c.b16 %v779, %v776
    %v825 = vpack.c.b16 %v780, %v777
    %v826 = vpack.c.b16 %v784, %v781
    %v827 = vpack.c.b16 %v785, %v782
    %v828 = vpack.c.b16 %v786, %v783
    %v829 = vpack.c.b16 %v790, %v787
    %v830 = vpack.c.b16 %v791, %v788
    %v831 = vpack.c.b16 %v792, %v789
    %v832 = vpack.c.b16 %v796, %v793
    %v833 = vpack.c.b16 %v797, %v794
    %v834 = vpack.c.b16 %v798, %v795
    %v835 = vpack.c.b16 %v802, %v799
    %v836 = vpack.c.b16 %v803, %v800
    %v837 = vpack.c.b16 %v804, %v801
    %v838 = vpack.c.b16 %v808, %v805
    %v839 = vpack.c.b16 %v809, %v806
    %v840 = vpack.c.b16 %v810, %v807
    %v841 = vpack.c.b16 %v814, %v811
    %v842 = vpack.c.b16 %v815, %v812
    %v843 = vpack.c.b16 %v816, %v813
    %v844 = vpack.c.b16 %v820, %v817
    %v845 = vpack.c.b16 %v821, %v818
    %v846 = vpack.c.b16 %v822, %v819
    %871 = vmatprep.subr.bf16.mxu0 %v845
    %872 = vmatpush1.bf16.msra.mxu0 %v844
    %873 = vmatprep.subr.bf16.mxu0 %v842
    %874 = vmatpush1.bf16.msra.mxu0 %v841
    %875 = vmatprep.subr.bf16.mxu0 %v839
    %876 = vmatpush1.bf16.msra.mxu0 %v838
    %877 = vmatprep.subr.bf16.mxu0 %v836
    %878 = vmatpush1.bf16.msra.mxu0 %v835
    %879 = vmatprep.subr.bf16.mxu0 %v833
    %880 = vmatpush1.bf16.msra.mxu0 %v832
    %881 = vmatprep.subr.bf16.mxu0 %v830
    %882 = vmatpush1.bf16.msra.mxu0 %v829
    %883 = vmatprep.subr.bf16.mxu0 %v827
    %884 = vmatpush1.bf16.msra.mxu0 %v826
    %885 = vmatprep.subr.bf16.mxu0 %v824
    %886 = vmatpush1.bf16.msra.mxu0 %v823
    %887 = vmatprep.subr.bf16.mxu0 0
    %888 = vmatpush2.bf16.msra.mxu0 0
    %889 = vmatprep.subr.bf16.mxu0 0
    %890 = vmatpush2.bf16.msra.mxu0 0
    %891 = vmatprep.subr.bf16.mxu0 0
    %892 = vmatpush2.bf16.msra.mxu0 0
    %893 = vmatprep.subr.bf16.mxu0 0
    %894 = vmatpush2.bf16.msra.mxu0 0
    %895 = vmatprep.subr.bf16.mxu0 0
    %896 = vmatpush2.bf16.msra.mxu0 0
    %897 = vmatprep.subr.bf16.mxu0 0
    %898 = vmatpush2.bf16.msra.mxu0 0
    %899 = vmatprep.subr.bf16.mxu0 0
    %900 = vmatpush2.bf16.msra.mxu0 0
    %901 = vmatprep.subr.bf16.mxu0 0
    %902 = vmatpush2.bf16.msra.mxu0 0
    %903 = vmatprep.mubr.bf16.mxu0 0
    %904 = vmatmul.mubr.bf16.gmra.mxu0 %v693
    %v905 = vpop.f32.mrf.mxu0
    %v906 = vadd.f32 %v731, %v905
    %v907 = vpop.f32.mrf.mxu0
    %v908 = vadd.f32 %v735, %v907
    %v909 = vpop.f32.mrf.mxu0
    %v910 = vpop.f32.mrf.mxu0
    %911 = vdwg.mxu0
    %912 = vmatprep.subr.bf16.mxu0 0
    %913 = vmatpush1.bf16.msra.mxu0 %v846
    %914 = vmatprep.subr.bf16.mxu0 0
    %915 = vmatpush1.bf16.msra.mxu0 %v843
    %916 = vmatprep.subr.bf16.mxu0 0
    %917 = vmatpush1.bf16.msra.mxu0 %v840
    %918 = vmatprep.subr.bf16.mxu0 0
    %919 = vmatpush1.bf16.msra.mxu0 %v837
    %920 = vmatprep.subr.bf16.mxu0 0
    %921 = vmatpush1.bf16.msra.mxu0 %v834
    %922 = vmatprep.subr.bf16.mxu0 0
    %923 = vmatpush1.bf16.msra.mxu0 %v831
    %924 = vmatprep.subr.bf16.mxu0 0
    %925 = vmatpush1.bf16.msra.mxu0 %v828
    %926 = vmatprep.subr.bf16.mxu0 0
    %927 = vmatpush1.bf16.msra.mxu0 %v825
    %928 = vmatprep.subr.bf16.mxu0 0
    %929 = vmatpush2.bf16.msra.mxu0 0
    %930 = vmatprep.subr.bf16.mxu0 0
    %931 = vmatpush2.bf16.msra.mxu0 0
    %932 = vmatprep.subr.bf16.mxu0 0
    %933 = vmatpush2.bf16.msra.mxu0 0
    %934 = vmatprep.subr.bf16.mxu0 0
    %935 = vmatpush2.bf16.msra.mxu0 0
    %936 = vmatprep.subr.bf16.mxu0 0
    %937 = vmatpush2.bf16.msra.mxu0 0
    %938 = vmatprep.subr.bf16.mxu0 0
    %939 = vmatpush2.bf16.msra.mxu0 0
    %940 = vmatprep.subr.bf16.mxu0 0
    %941 = vmatpush2.bf16.msra.mxu0 0
    %942 = vmatprep.subr.bf16.mxu0 0
    %943 = vmatpush2.bf16.msra.mxu0 0
    %944 = vmatprep.mubr.bf16.mxu0 0
    %945 = vmatmul.mubr.bf16.gmra.mxu0 %v693
    %v946 = vpop.f32.mrf.mxu0
    %v947 = vadd.f32 %v739, %v946
    %v948 = vpop.f32.mrf.mxu0
    %v949 = vpop.f32.mrf.mxu0
    %v950 = vpop.f32.mrf.mxu0
    %951 = vdwg.mxu0
    %v952 = vmax.f32 %v906, 0.0
    %v953 = vmax.f32 %v908, 0.0
    %v954 = vmax.f32 %v947, 0.0
    %v955 = vpack.c.bf16 %v952, %v952
    %v956 = vpack.c.bf16 %v953, %v953
    %v957 = vpack.c.bf16 %v954, %v954
    %v958 = vld [vmem:[#allocation13] sm:$0xff]
    %v959 = vld [vmem:[#allocation13 + $0x8] sm:$0xff]
    %v960 = vld [vmem:[#allocation13 + $0x10] sm:$0xff]
    %v961 = vld [vmem:[#allocation13 + $0x18] sm:$0xff]
    %v962 = vld [vmem:[#allocation13 + $0x20] sm:$0xff]
    %v963 = vld [vmem:[#allocation13 + $0x28] sm:$0xff]
    %v964 = vld [vmem:[#allocation13 + $0x30] sm:$0xff]
    %v965 = vld [vmem:[#allocation13 + $0x38] sm:$0xff]
    %v966 = vld [vmem:[#allocation13 + $0x40] sm:$0xff]
    %v967 = vld [vmem:[#allocation13 + $0x48] sm:$0xff]
    %v968 = vld [vmem:[#allocation13 + $0x50] sm:$0xff]
    %v969 = vld [vmem:[#allocation13 + $0x58] sm:$0xff]
    %v970 = vld [vmem:[#allocation13 + $0x60] sm:$0xff]
    %v971 = vld [vmem:[#allocation13 + $0x68] sm:$0xff]
    %v972 = vld [vmem:[#allocation13 + $0x70] sm:$0xff]
    %v973 = vld [vmem:[#allocation13 + $0x78] sm:$0xff]
    %v974 = vld [vmem:[#allocation13 + $0x80] sm:$0xff]
    %v975 = vld [vmem:[#allocation13 + $0x88] sm:$0xff]
    %v976 = vld [vmem:[#allocation13 + $0x90] sm:$0xff]
    %v977 = vld [vmem:[#allocation13 + $0x98] sm:$0xff]
    %v978 = vld [vmem:[#allocation13 + $0xa0] sm:$0xff]
    %v979 = vld [vmem:[#allocation13 + $0xa8] sm:$0xff]
    %v980 = vld [vmem:[#allocation13 + $0xb0] sm:$0xff]
    %v981 = vld [vmem:[#allocation13 + $0xb8] sm:$0xff]
    %v982 = vld [vmem:[#allocation13 + $0xc0] sm:$0xff]
    %v983 = vld [vmem:[#allocation13 + $0xc8] sm:$0xff]
    %v984 = vld [vmem:[#allocation13 + $0xd0] sm:$0xff]
    %v985 = vld [vmem:[#allocation13 + $0xd8] sm:$0xff]
    %v986 = vld [vmem:[#allocation13 + $0xe0] sm:$0xff]
    %v987 = vld [vmem:[#allocation13 + $0xe8] sm:$0xff]
    %v988 = vld [vmem:[#allocation13 + $0xf0] sm:$0xff]
    %v989 = vld [vmem:[#allocation13 + $0xf8] sm:$0xff]
    %v990 = vld [vmem:[#allocation13 + $0x100] sm:$0xff]
    %v991 = vld [vmem:[#allocation13 + $0x108] sm:$0xff]
    %v992 = vld [vmem:[#allocation13 + $0x110] sm:$0xff]
    %v993 = vld [vmem:[#allocation13 + $0x118] sm:$0xff]
    %v994 = vld [vmem:[#allocation13 + $0x120] sm:$0xff]
    %v995 = vld [vmem:[#allocation13 + $0x128] sm:$0xff]
    %v996 = vld [vmem:[#allocation13 + $0x130] sm:$0xff]
    %v997 = vld [vmem:[#allocation13 + $0x138] sm:$0xff]
    %v998 = vld [vmem:[#allocation13 + $0x140] sm:$0xff]
    %v999 = vld [vmem:[#allocation13 + $0x148] sm:$0xff]
    %v1000 = vld [vmem:[#allocation13 + $0x150] sm:$0xff]
    %v1001 = vld [vmem:[#allocation13 + $0x158] sm:$0xff]
    %v1002 = vld [vmem:[#allocation13 + $0x160] sm:$0xff]
    %v1003 = vld [vmem:[#allocation13 + $0x168] sm:$0xff]
    %v1004 = vld [vmem:[#allocation13 + $0x170] sm:$0xff]
    %v1005 = vld [vmem:[#allocation13 + $0x178] sm:$0xff]
    %v1006 = vld [vmem:[%s10] sm:$0x3]
    %v1008 = vlaneseq
    %v1009 = vshrl.u32 %v1008, 7
    %v1010 = vsub.s32 0, %v1009
    %v1011 = vrot.slane %v1006, %v1010
    %v1012 = vlaneseq
    %v1013 = vshrl.u32 %v1012, 7
    %v1014 = vsub.s32 1, %v1013
    %v1015 = vrot.slane %v1006, %v1014
    %v1066 = vunpack.c.l.b16 %v958
    %v1067 = vunpack.c.h.b16 %v958
    %v1068 = vunpack.c.l.b16 %v959
    %v1069 = vunpack.c.h.b16 %v959
    %v1070 = vunpack.c.l.b16 %v960
    %v1071 = vunpack.c.h.b16 %v960
    %v1072 = vunpack.c.l.b16 %v961
    %v1073 = vunpack.c.h.b16 %v961
    %v1074 = vunpack.c.l.b16 %v962
    %v1075 = vunpack.c.h.b16 %v962
    %v1076 = vunpack.c.l.b16 %v963
    %v1077 = vunpack.c.h.b16 %v963
    %v1078 = vunpack.c.l.b16 %v964
    %v1079 = vunpack.c.h.b16 %v964
    %v1080 = vunpack.c.l.b16 %v965
    %v1081 = vunpack.c.h.b16 %v965
    %v1082 = vunpack.c.l.b16 %v966
    %v1083 = vunpack.c.h.b16 %v966
    %v1084 = vunpack.c.l.b16 %v967
    %v1085 = vunpack.c.h.b16 %v967
    %v1086 = vunpack.c.l.b16 %v968
    %v1087 = vunpack.c.h.b16 %v968
    %v1088 = vunpack.c.l.b16 %v969
    %v1089 = vunpack.c.h.b16 %v969
    %v1090 = vunpack.c.l.b16 %v970
    %v1091 = vunpack.c.h.b16 %v970
    %v1092 = vunpack.c.l.b16 %v971
    %v1093 = vunpack.c.h.b16 %v971
    %v1094 = vunpack.c.l.b16 %v972
    %v1095 = vunpack.c.h.b16 %v972
    %v1096 = vunpack.c.l.b16 %v973
    %v1097 = vunpack.c.h.b16 %v973
    %v1098 = vunpack.c.l.b16 %v974
    %v1099 = vunpack.c.h.b16 %v974
    %v1100 = vunpack.c.l.b16 %v975
    %v1101 = vunpack.c.h.b16 %v975
    %v1102 = vunpack.c.l.b16 %v976
    %v1103 = vunpack.c.h.b16 %v976
    %v1104 = vunpack.c.l.b16 %v977
    %v1105 = vunpack.c.h.b16 %v977
    %v1106 = vunpack.c.l.b16 %v978
    %v1107 = vunpack.c.h.b16 %v978
    %v1108 = vunpack.c.l.b16 %v979
    %v1109 = vunpack.c.h.b16 %v979
    %v1110 = vunpack.c.l.b16 %v980
    %v1111 = vunpack.c.h.b16 %v980
    %v1112 = vunpack.c.l.b16 %v981
    %v1113 = vunpack.c.h.b16 %v981
    %v1114 = vunpack.c.l.b16 %v982
    %v1115 = vunpack.c.h.b16 %v982
    %v1116 = vunpack.c.l.b16 %v983
    %v1117 = vunpack.c.h.b16 %v983
    %v1118 = vunpack.c.l.b16 %v984
    %v1119 = vunpack.c.h.b16 %v984
    %v1120 = vunpack.c.l.b16 %v985
    %v1121 = vunpack.c.h.b16 %v985
    %v1122 = vunpack.c.l.b16 %v986
    %v1123 = vunpack.c.h.b16 %v986
    %v1124 = vunpack.c.l.b16 %v987
    %v1125 = vunpack.c.h.b16 %v987
    %v1126 = vunpack.c.l.b16 %v988
    %v1127 = vunpack.c.h.b16 %v988
    %v1128 = vunpack.c.l.b16 %v989
    %v1129 = vunpack.c.h.b16 %v989
    %v1130 = vunpack.c.l.b16 %v990
    %v1131 = vunpack.c.h.b16 %v990
    %v1132 = vunpack.c.l.b16 %v991
    %v1133 = vunpack.c.h.b16 %v991
    %v1134 = vunpack.c.l.b16 %v992
    %v1135 = vunpack.c.h.b16 %v992
    %v1136 = vunpack.c.l.b16 %v993
    %v1137 = vunpack.c.h.b16 %v993
    %v1138 = vunpack.c.l.b16 %v994
    %v1139 = vunpack.c.h.b16 %v994
    %v1140 = vunpack.c.l.b16 %v995
    %v1141 = vunpack.c.h.b16 %v995
    %v1142 = vunpack.c.l.b16 %v996
    %v1143 = vunpack.c.h.b16 %v996
    %v1144 = vunpack.c.l.b16 %v997
    %v1145 = vunpack.c.h.b16 %v997
    %v1146 = vunpack.c.l.b16 %v998
    %v1147 = vunpack.c.h.b16 %v998
    %v1148 = vunpack.c.l.b16 %v999
    %v1149 = vunpack.c.h.b16 %v999
    %v1150 = vunpack.c.l.b16 %v1000
    %v1151 = vunpack.c.h.b16 %v1000
    %v1152 = vunpack.c.l.b16 %v1001
    %v1153 = vunpack.c.h.b16 %v1001
    %v1154 = vunpack.c.l.b16 %v1002
    %v1155 = vunpack.c.h.b16 %v1002
    %v1156 = vunpack.c.l.b16 %v1003
    %v1157 = vunpack.c.h.b16 %v1003
    %v1158 = vunpack.c.l.b16 %v1004
    %v1159 = vunpack.c.h.b16 %v1004
    %v1160 = vunpack.c.l.b16 %v1005
    %v1161 = vunpack.c.h.b16 %v1005
    %v1162 = vpack.c.b16 %v1068, %v1066
    %v1163 = vpack.c.b16 %v1069, %v1067
    %v1164 = vpack.c.b16 %v1072, %v1070
    %v1165 = vpack.c.b16 %v1073, %v1071
    %v1166 = vpack.c.b16 %v1076, %v1074
    %v1167 = vpack.c.b16 %v1077, %v1075
    %v1168 = vpack.c.b16 %v1080, %v1078
    %v1169 = vpack.c.b16 %v1081, %v1079
    %v1170 = vpack.c.b16 %v1084, %v1082
    %v1171 = vpack.c.b16 %v1085, %v1083
    %v1172 = vpack.c.b16 %v1088, %v1086
    %v1173 = vpack.c.b16 %v1089, %v1087
    %v1174 = vpack.c.b16 %v1092, %v1090
    %v1175 = vpack.c.b16 %v1093, %v1091
    %v1176 = vpack.c.b16 %v1096, %v1094
    %v1177 = vpack.c.b16 %v1097, %v1095
    %v1178 = vpack.c.b16 %v1100, %v1098
    %v1179 = vpack.c.b16 %v1101, %v1099
    %v1180 = vpack.c.b16 %v1104, %v1102
    %v1181 = vpack.c.b16 %v1105, %v1103
    %v1182 = vpack.c.b16 %v1108, %v1106
    %v1183 = vpack.c.b16 %v1109, %v1107
    %v1184 = vpack.c.b16 %v1112, %v1110
    %v1185 = vpack.c.b16 %v1113, %v1111
    %v1186 = vpack.c.b16 %v1116, %v1114
    %v1187 = vpack.c.b16 %v1117, %v1115
    %v1188 = vpack.c.b16 %v1120, %v1118
    %v1189 = vpack.c.b16 %v1121, %v1119
    %v1190 = vpack.c.b16 %v1124, %v1122
    %v1191 = vpack.c.b16 %v1125, %v1123
    %v1192 = vpack.c.b16 %v1128, %v1126
    %v1193 = vpack.c.b16 %v1129, %v1127
    %v1194 = vpack.c.b16 %v1132, %v1130
    %v1195 = vpack.c.b16 %v1133, %v1131
    %v1196 = vpack.c.b16 %v1136, %v1134
    %v1197 = vpack.c.b16 %v1137, %v1135
    %v1198 = vpack.c.b16 %v1140, %v1138
    %v1199 = vpack.c.b16 %v1141, %v1139
    %v1200 = vpack.c.b16 %v1144, %v1142
    %v1201 = vpack.c.b16 %v1145, %v1143
    %v1202 = vpack.c.b16 %v1148, %v1146
    %v1203 = vpack.c.b16 %v1149, %v1147
    %v1204 = vpack.c.b16 %v1152, %v1150
    %v1205 = vpack.c.b16 %v1153, %v1151
    %v1206 = vpack.c.b16 %v1156, %v1154
    %v1207 = vpack.c.b16 %v1157, %v1155
    %v1208 = vpack.c.b16 %v1160, %v1158
    %v1209 = vpack.c.b16 %v1161, %v1159
    %1258 = vmatprep.subr.bf16.mxu0 %v1177
    %1259 = vmatpush1.bf16.msra.mxu0 %v1176
    %1260 = vmatprep.subr.bf16.mxu0 %v1175
    %1261 = vmatpush1.bf16.msra.mxu0 %v1174
    %1262 = vmatprep.subr.bf16.mxu0 %v1173
    %1263 = vmatpush1.bf16.msra.mxu0 %v1172
    %1264 = vmatprep.subr.bf16.mxu0 %v1171
    %1265 = vmatpush1.bf16.msra.mxu0 %v1170
    %1266 = vmatprep.subr.bf16.mxu0 %v1169
    %1267 = vmatpush1.bf16.msra.mxu0 %v1168
    %1268 = vmatprep.subr.bf16.mxu0 %v1167
    %1269 = vmatpush1.bf16.msra.mxu0 %v1166
    %1270 = vmatprep.subr.bf16.mxu0 %v1165
    %1271 = vmatpush1.bf16.msra.mxu0 %v1164
    %1272 = vmatprep.subr.bf16.mxu0 %v1163
    %1273 = vmatpush1.bf16.msra.mxu0 %v1162
    %1274 = vmatprep.subr.bf16.mxu0 %v1193
    %1275 = vmatpush2.bf16.msra.mxu0 %v1192
    %1276 = vmatprep.subr.bf16.mxu0 %v1191
    %1277 = vmatpush2.bf16.msra.mxu0 %v1190
    %1278 = vmatprep.subr.bf16.mxu0 %v1189
    %1279 = vmatpush2.bf16.msra.mxu0 %v1188
    %1280 = vmatprep.subr.bf16.mxu0 %v1187
    %1281 = vmatpush2.bf16.msra.mxu0 %v1186
    %1282 = vmatprep.subr.bf16.mxu0 %v1185
    %1283 = vmatpush2.bf16.msra.mxu0 %v1184
    %1284 = vmatprep.subr.bf16.mxu0 %v1183
    %1285 = vmatpush2.bf16.msra.mxu0 %v1182
    %1286 = vmatprep.subr.bf16.mxu0 %v1181
    %1287 = vmatpush2.bf16.msra.mxu0 %v1180
    %1288 = vmatprep.subr.bf16.mxu0 %v1179
    %1289 = vmatpush2.bf16.msra.mxu0 %v1178
    %1290 = vmatprep.mubr.bf16.mxu0 %v956
    %1291 = vmatmul.mubr.bf16.gmra.mxu0 %v955
    %v1292 = vpop.f32.mrf.mxu0
    %v1293 = vadd.f32 %v1011, %v1292
    %v1294 = vpop.f32.mrf.mxu0
    %v1295 = vadd.f32 %v1015, %v1294
    %v1296 = vpop.f32.mrf.mxu0
    %v1297 = vpop.f32.mrf.mxu0
    %1298 = vdwg.mxu0
    %1299 = vmatprep.subr.bf16.mxu0 %v1209
    %1300 = vmatpush1.bf16.msra.mxu0 %v1208
    %1301 = vmatprep.subr.bf16.mxu0 %v1207
    %1302 = vmatpush1.bf16.msra.mxu0 %v1206
    %1303 = vmatprep.subr.bf16.mxu0 %v1205
    %1304 = vmatpush1.bf16.msra.mxu0 %v1204
    %1305 = vmatprep.subr.bf16.mxu0 %v1203
    %1306 = vmatpush1.bf16.msra.mxu0 %v1202
    %1307 = vmatprep.subr.bf16.mxu0 %v1201
    %1308 = vmatpush1.bf16.msra.mxu0 %v1200
    %1309 = vmatprep.subr.bf16.mxu0 %v1199
    %1310 = vmatpush1.bf16.msra.mxu0 %v1198
    %1311 = vmatprep.subr.bf16.mxu0 %v1197
    %1312 = vmatpush1.bf16.msra.mxu0 %v1196
    %1313 = vmatprep.subr.bf16.mxu0 %v1195
    %1314 = vmatpush1.bf16.msra.mxu0 %v1194
    %1315 = vmatprep.subr.bf16.mxu0 0
    %1316 = vmatpush2.bf16.msra.mxu0 0
    %1317 = vmatprep.subr.bf16.mxu0 0
    %1318 = vmatpush2.bf16.msra.mxu0 0
    %1319 = vmatprep.subr.bf16.mxu0 0
    %1320 = vmatpush2.bf16.msra.mxu0 0
    %1321 = vmatprep.subr.bf16.mxu0 0
    %1322 = vmatpush2.bf16.msra.mxu0 0
    %1323 = vmatprep.subr.bf16.mxu0 0
    %1324 = vmatpush2.bf16.msra.mxu0 0
    %1325 = vmatprep.subr.bf16.mxu0 0
    %1326 = vmatpush2.bf16.msra.mxu0 0
    %1327 = vmatprep.subr.bf16.mxu0 0
    %1328 = vmatpush2.bf16.msra.mxu0 0
    %1329 = vmatprep.subr.bf16.mxu0 0
    %1330 = vmatpush2.bf16.msra.mxu0 0
    %1331 = vmatprep.mubr.bf16.mxu0 0
    %1332 = vmatmul.mubr.bf16.gmra.mxu0 %v957
    %v1333 = vpop.f32.mrf.mxu0
    %v1334 = vadd.f32 %v1293, %v1333
    %v1335 = vpop.f32.mrf.mxu0
    %v1336 = vadd.f32 %v1295, %v1335
    %v1337 = vpop.f32.mrf.mxu0
    %v1338 = vpop.f32.mrf.mxu0
    %1339 = vdwg.mxu0
    %v1340 = vmax.f32 %v1334, 0.0
    %v1341 = vmax.f32 %v1336, 0.0
    %v1342 = vpack.c.bf16 %v1340, %v1340
    %v1343 = vpack.c.bf16 %v1341, %v1341
    %v1344 = vld [vmem:[#allocation14] sm:$0xf]
    %v1345 = vld [vmem:[#allocation14 + $0x4] sm:$0xf]
    %v1346 = vld [vmem:[#allocation14 + $0x8] sm:$0xf]
    %v1347 = vld [vmem:[#allocation14 + $0xc] sm:$0xf]
    %v1348 = vld [vmem:[#allocation14 + $0x10] sm:$0xf]
    %v1349 = vld [vmem:[#allocation14 + $0x14] sm:$0xf]
    %v1350 = vld [vmem:[#allocation14 + $0x18] sm:$0xf]
    %v1351 = vld [vmem:[#allocation14 + $0x1c] sm:$0xf]
    %v1352 = vld [vmem:[#allocation14 + $0x20] sm:$0xf]
    %v1353 = vld [vmem:[#allocation14 + $0x24] sm:$0xf]
    %v1354 = vld [vmem:[#allocation14 + $0x28] sm:$0xf]
    %v1355 = vld [vmem:[#allocation14 + $0x2c] sm:$0xf]
    %v1356 = vld [vmem:[#allocation14 + $0x30] sm:$0xf]
    %v1357 = vld [vmem:[#allocation14 + $0x34] sm:$0xf]
    %v1358 = vld [vmem:[#allocation14 + $0x38] sm:$0xf]
    %v1359 = vld [vmem:[#allocation14 + $0x3c] sm:$0xf]
    %v1360 = vld [vmem:[#allocation14 + $0x40] sm:$0xf]
    %v1361 = vld [vmem:[#allocation14 + $0x44] sm:$0xf]
    %v1362 = vld [vmem:[#allocation14 + $0x48] sm:$0xf]
    %v1363 = vld [vmem:[#allocation14 + $0x4c] sm:$0xf]
    %v1364 = vld [vmem:[#allocation14 + $0x50] sm:$0xf]
    %v1365 = vld [vmem:[#allocation14 + $0x54] sm:$0xf]
    %v1366 = vld [vmem:[#allocation14 + $0x58] sm:$0xf]
    %v1367 = vld [vmem:[#allocation14 + $0x5c] sm:$0xf]
    %v1368 = vld [vmem:[#allocation14 + $0x60] sm:$0xf]
    %v1369 = vld [vmem:[#allocation14 + $0x64] sm:$0xf]
    %v1370 = vld [vmem:[#allocation14 + $0x68] sm:$0xf]
    %v1371 = vld [vmem:[#allocation14 + $0x6c] sm:$0xf]
    %v1372 = vld [vmem:[#allocation14 + $0x70] sm:$0xf]
    %v1373 = vld [vmem:[#allocation14 + $0x74] sm:$0xf]
    %v1374 = vld [vmem:[#allocation14 + $0x78] sm:$0xf]
    %v1375 = vld [vmem:[#allocation14 + $0x7c] sm:$0xf]
    %v1376 = vld [vmem:[%s12] sm:$0x1]
    %v1378 = vlaneseq
    %v1379 = vshrl.u32 %v1378, 7
    %v1380 = vsub.s32 0, %v1379
    %v1381 = vrot.slane %v1376, %v1380
    %v1415 = vunpack.c.l.b16 %v1344
    %v1416 = vunpack.c.l.b16 %v1345
    %v1417 = vunpack.c.l.b16 %v1346
    %v1418 = vunpack.c.l.b16 %v1347
    %v1419 = vunpack.c.l.b16 %v1348
    %v1420 = vunpack.c.l.b16 %v1349
    %v1421 = vunpack.c.l.b16 %v1350
    %v1422 = vunpack.c.l.b16 %v1351
    %v1423 = vunpack.c.l.b16 %v1352
    %v1424 = vunpack.c.l.b16 %v1353
    %v1425 = vunpack.c.l.b16 %v1354
    %v1426 = vunpack.c.l.b16 %v1355
    %v1427 = vunpack.c.l.b16 %v1356
    %v1428 = vunpack.c.l.b16 %v1357
    %v1429 = vunpack.c.l.b16 %v1358
    %v1430 = vunpack.c.l.b16 %v1359
    %v1431 = vunpack.c.l.b16 %v1360
    %v1432 = vunpack.c.l.b16 %v1361
    %v1433 = vunpack.c.l.b16 %v1362
    %v1434 = vunpack.c.l.b16 %v1363
    %v1435 = vunpack.c.l.b16 %v1364
    %v1436 = vunpack.c.l.b16 %v1365
    %v1437 = vunpack.c.l.b16 %v1366
    %v1438 = vunpack.c.l.b16 %v1367
    %v1439 = vunpack.c.l.b16 %v1368
    %v1440 = vunpack.c.l.b16 %v1369
    %v1441 = vunpack.c.l.b16 %v1370
    %v1442 = vunpack.c.l.b16 %v1371
    %v1443 = vunpack.c.l.b16 %v1372
    %v1444 = vunpack.c.l.b16 %v1373
    %v1445 = vunpack.c.l.b16 %v1374
    %v1446 = vunpack.c.l.b16 %v1375
    %v1447 = vpack.c.b16 %v1416, %v1415
    %v1448 = vpack.c.b16 %v1418, %v1417
    %v1449 = vpack.c.b16 %v1420, %v1419
    %v1450 = vpack.c.b16 %v1422, %v1421
    %v1451 = vpack.c.b16 %v1424, %v1423
    %v1452 = vpack.c.b16 %v1426, %v1425
    %v1453 = vpack.c.b16 %v1428, %v1427
    %v1454 = vpack.c.b16 %v1430, %v1429
    %v1455 = vpack.c.b16 %v1432, %v1431
    %v1456 = vpack.c.b16 %v1434, %v1433
    %v1457 = vpack.c.b16 %v1436, %v1435
    %v1458 = vpack.c.b16 %v1438, %v1437
    %v1459 = vpack.c.b16 %v1440, %v1439
    %v1460 = vpack.c.b16 %v1442, %v1441
    %v1461 = vpack.c.b16 %v1444, %v1443
    %v1462 = vpack.c.b16 %v1446, %v1445
    %1479 = vmatprep.subr.bf16.mxu0 0
    %1480 = vmatpush1.bf16.msra.mxu0 %v1454
    %1481 = vmatprep.subr.bf16.mxu0 0
    %1482 = vmatpush1.bf16.msra.mxu0 %v1453
    %1483 = vmatprep.subr.bf16.mxu0 0
    %1484 = vmatpush1.bf16.msra.mxu0 %v1452
    %1485 = vmatprep.subr.bf16.mxu0 0
    %1486 = vmatpush1.bf16.msra.mxu0 %v1451
    %1487 = vmatprep.subr.bf16.mxu0 0
    %1488 = vmatpush1.bf16.msra.mxu0 %v1450
    %1489 = vmatprep.subr.bf16.mxu0 0
    %1490 = vmatpush1.bf16.msra.mxu0 %v1449
    %1491 = vmatprep.subr.bf16.mxu0 0
    %1492 = vmatpush1.bf16.msra.mxu0 %v1448
    %1493 = vmatprep.subr.bf16.mxu0 0
    %1494 = vmatpush1.bf16.msra.mxu0 %v1447
    %1495 = vmatprep.subr.bf16.mxu0 0
    %1496 = vmatpush2.bf16.msra.mxu0 %v1462
    %1497 = vmatprep.subr.bf16.mxu0 0
    %1498 = vmatpush2.bf16.msra.mxu0 %v1461
    %1499 = vmatprep.subr.bf16.mxu0 0
    %1500 = vmatpush2.bf16.msra.mxu0 %v1460
    %1501 = vmatprep.subr.bf16.mxu0 0
    %1502 = vmatpush2.bf16.msra.mxu0 %v1459
    %1503 = vmatprep.subr.bf16.mxu0 0
    %1504 = vmatpush2.bf16.msra.mxu0 %v1458
    %1505 = vmatprep.subr.bf16.mxu0 0
    %1506 = vmatpush2.bf16.msra.mxu0 %v1457
    %1507 = vmatprep.subr.bf16.mxu0 0
    %1508 = vmatpush2.bf16.msra.mxu0 %v1456
    %1509 = vmatprep.subr.bf16.mxu0 0
    %1510 = vmatpush2.bf16.msra.mxu0 %v1455
    %1511 = vmatprep.mubr.bf16.mxu0 %v1343
    %1512 = vmatmul.mubr.bf16.gmra.mxu0 %v1342
    %v1513 = vpop.f32.mrf.mxu0
    %v1514 = vadd.f32 %v1381, %v1513
    %v1515 = vpop.f32.mrf.mxu0
    %v1516 = vpop.f32.mrf.mxu0
    %v1517 = vpop.f32.mrf.mxu0
    %1518 = vdwg.mxu0
    %1519 = vst [vmem:[#allocation16] sm:$0xff] %v1514
    // Predicated region
    $region86: #{tpu_custom_call.1} parent=1 // pred_check
      _
    $region87: #{tpu_custom_call.1} parent=1 // pred_check_branch
      %1521 = sbr.rel (0) target = $region89
    $region88: #{tpu_custom_call.1} parent=1 // pred_region
      %s1523 = ssub.s32 128, 128
      %1524 = vsyncadd [#allocation4], %s1523
      %s1526 = sshll.u32 [#allocation16], 4
      %s1527 = int_to_ptr.vmem [resolvable:$true] %s1526
      %1529 = dma.vmem_to_hbm [thread:$0]  %s1527, 128, %s13, [#allocation4]
    $region89: #{tpu_custom_call.1} parent=1 // pred_fallthru
      _
    // Predicated region
    $region90: #{tpu_custom_call.1} parent=1 // pred_check
      _
    $region91: #{tpu_custom_call.1} parent=1 // pred_check_branch
      %1531 = sbr.rel (0) target = $region93
    $region92: #{tpu_custom_call.1} parent=1 // pred_region
      %1532 = dma.done [#allocation4], 128
    $region93: #{tpu_custom_call.1} parent=1 // pred_fallthru
      _
    %1533 = vsyncpa [#allocation3], 1
    %1534 = vsyncpa [#allocation6], 1
    %1535 = vsyncpa [#allocation9], 1
    %1536 = vsyncpa [#allocation12], 1
    %1537 = vsyncpa [#allocation15], 1
    %1538 = vsyncpa [#allocation4], 1

</llo_original>
